<compile_context>
chip_gen: v5e
topology: v5e:2x2
jax: 0.10.0
libtpu: 0.0.40
codegen_flags: <defaults>
</compile_context>

<pallas_src>
import functools

import numpy as np
import jax
import jax.numpy as jnp
from jax.experimental import pallas as pl
from jax.experimental.pallas import tpu as pltpu

_LANE = 128


def _round_up(x: int, m: int) -> int:
    return (x + m - 1) // m * m


def _upper_tri_gather_indices(n: int) -> np.ndarray:
    """idx (n*n,) such that x[:, idx].reshape(B, n, n) reproduces
    SPDUnVectorizeFunction.forward (upper fill + add transpose + halve diag)."""
    d = n * (n + 1) // 2
    iu = np.triu_indices(n)                        # same ordering as torch.triu_indices
    pos = np.zeros((n, n), dtype=np.int32)
    pos[iu] = np.arange(d, dtype=np.int32)
    pos = pos + pos.T - np.diag(np.diag(pos))      # packed index of entry (i, j)
    return pos.reshape(-1)


def _vmem_budget_and_limit():
    """Generation-aware VMEM sizing: (block budget, explicit scoped-VMEM limit)."""
    try:
        phys = int(pltpu.get_tpu_info().vmem_capacity_bytes)   # 128 MiB v5e/v6e, 64 MiB v7x
    except Exception:
        phys = 64 << 20                            # conservative (v7x-sized) fallback
    budget = max(8 << 20, phys // 4)               # target for double-buffered blocks
    limit = int(min(phys // 2, 64 << 20))          # explicit limit (v5e default is 16 MiB)
    return budget, limit


def _pick_tile(total: int, cap: int, align: int) -> int:
    """Largest multiple of `align` that divides `total` (itself a multiple of align)
    and is <= cap.  Avoids jnp.pad copies beyond the 128-alignment."""
    m = total // align
    best, f = 1, 1
    while f * f <= m:
        if m % f == 0:
            for d in (f, m // f):
                if d * align <= cap:
                    best = max(best, d)
        f += 1
    return best * align


# --------------------------- reconstruction kernels ---------------------------

def _recon_lane_dense_kernel(u_ref, s_ref, out_ref):
    # Small-n path.  u: (n, n, TB) eigenvectors with the batch tile in the 128-lane axis,
    # s: (n, TB).  out[i, j, b] = sum_k u[i,k,b] * exp(|s[k,b]|) * u[j,k,b].
    # k-accumulated outer products: only an (n, n, TB) accumulator stays live; the
    # (n, n, n, TB) broadcast intermediate of the naive contraction never materializes.
    n = u_ref.shape[0]
    es = jnp.exp(jnp.abs(s_ref[...]))              # (n, TB) — EUP slot
    acc = None
    for k in range(n):                             # static unroll; n <= 32
        u_k = u_ref[:, k, :]                       # (n, TB) VMEM load
        term = (u_k * es[k, :][None, :])[:, None, :] * u_k[None, :, :]   # (n, n, TB)
        acc = term if acc is None else acc + term
    out_ref[...] = acc


def _recon_batched_mm_kernel(u_ref, s_ref, out_ref):
    # Large-n path.  u: (TB, n, n), s: (TB, 1, n); batched matmul on the MXU.
    u = u_ref[...]
    es = jnp.exp(jnp.abs(s_ref[...]))              # (TB, 1, n)
    scaled = u * es                                # U @ diag(exp(|s|))
    out_ref[...] = jnp.einsum("bik,bjk->bij", scaled, u,
                              preferred_element_type=jnp.float32)


# --------------------------------- wrapper ------------------------------------

def spd_untangent_space(x_vec: jnp.ndarray, n: int, unvectorize: bool = True) -> jnp.ndarray:
    x_vec = x_vec.astype(jnp.float32)
    B = x_vec.shape[0]

    if unvectorize:
        d = n * (n + 1) // 2
        assert x_vec.shape == (B, d)
        # Pure gather — O(B*n^2), replaces the one-hot selection matmul entirely.
        idx = jnp.asarray(_upper_tri_gather_indices(n))
        mats = jnp.take(x_vec, idx, axis=1).reshape(B, n, n)
    else:
        mats = x_vec.reshape(B, n, n)

    # TODO(synk): torch.svd / symmetric eigendecomposition has no Pallas TPU primitive;
    # computed with jnp.linalg.eigh in plain JAX glue.  For symmetric input,
    # U diag(exp(|lambda|)) U^T equals the SVD-based result (sign flips cancel).
    with jax.default_matmul_precision("float32"):
        s, u = jnp.linalg.eigh(mats)               # s: (B, n), u: (B, n, n)
    s = s.astype(jnp.float32)
    u = u.astype(jnp.float32)

    budget, vmem_limit = _vmem_budget_and_limit()

    if n <= 32:
        # ---- lane-dense VPU path: batch tile lives in the 128-lane axis ----
        if B <= _LANE:
            Bp, TB = B, B                          # single (possibly lane-sparse) tiny tile
        else:
            Bp = _round_up(B, _LANE)               # lane-dense stores (no vst.msk tails)
            # double-buffered (u in + out + s) blocks + spilled accumulator:
            cap = budget // ((5 * n * n + 2 * n) * 4)
            cap = min(cap, 2048)                   # bound accumulator spill per step
            if Bp >= 2 * _LANE:
                cap = min(cap, Bp // 2)            # keep >=2 grid steps (v7x has 2 TCs)
            TB = _pick_tile(Bp, max(cap, _LANE), _LANE)
        ut = jnp.transpose(u, (1, 2, 0))           # (n, n, B)   layout plumbing
        st = jnp.transpose(s, (1, 0))              # (n, B)
        if Bp != B:
            ut = jnp.pad(ut, ((0, 0), (0, 0), (0, Bp - B)))
            st = jnp.pad(st, ((0, 0), (0, Bp - B)))
        out_t = pl.pallas_call(
            _recon_lane_dense_kernel,
            grid=(Bp // TB,),
            in_specs=[
                pl.BlockSpec((n, n, TB), lambda b: (0, 0, b)),
                pl.BlockSpec((n, TB), lambda b: (0, b)),
            ],
            out_specs=pl.BlockSpec((n, n, TB), lambda b: (0, 0, b)),
            out_shape=jax.ShapeDtypeStruct((n, n, Bp), jnp.float32),
            compiler_params=pltpu.CompilerParams(
                dimension_semantics=("parallel",),
                vmem_limit_bytes=vmem_limit),
        )(ut, st)
        # TODO(synk): the module contract is (B, n, n); this transpose is one extra HBM
        # pass — return the (n, n, B) layout directly if the caller can consume it.
        return jnp.transpose(out_t[:, :, :B], (2, 0, 1))

    # ---- MXU path for larger n: batch-tiled (TB, n, n) blocks, VMEM-budget clamped ----
    bytes_per_mat = n * n * 4
    cap = max(1, budget // (4 * bytes_per_mat))    # double-buffered in + out blocks
    if cap >= 8:
        cap = cap // 8 * 8
    if B >= 2:
        cap = min(cap, max(1, (B + 1) // 2))       # keep >=2 grid steps for v7x
    TB = max(1, min(cap, B))
    if B % TB:                                     # prefer a divisor of B (skip jnp.pad)
        for t in range(TB, max(TB // 2, 1) - 1, -1):
            if B % t == 0:
                TB = t
                break
    Bp = _round_up(B, TB)
    u_in = u
    s_in = s.reshape(B, 1, n)                      # (B, 1, n): no sublane constraint on TB
    if Bp != B:
        u_in = jnp.pad(u_in, ((0, Bp - B), (0, 0), (0, 0)))
        s_in = jnp.pad(s_in, ((0, Bp - B), (0, 0), (0, 0)))
    out = pl.pallas_call(
        _recon_batched_mm_kernel,
        grid=(Bp // TB,),
        in_specs=[
            pl.BlockSpec((TB, n, n), lambda b: (b, 0, 0)),
            pl.BlockSpec((TB, 1, n), lambda b: (b, 0, 0)),
        ],
        out_specs=pl.BlockSpec((TB, n, n), lambda b: (b, 0, 0)),
        out_shape=jax.ShapeDtypeStruct((Bp, n, n), jnp.float32),
        compiler_params=pltpu.CompilerParams(
            dimension_semantics=("parallel",),
            vmem_limit_bytes=vmem_limit),
    )(u_in, s_in)
    return out[:B]


# --------------------------------- reference -----------------------------------

def _numpy_reference(x_vec: np.ndarray, n: int) -> np.ndarray:
    """Straight port of the PyTorch forward for verification."""
    B, _ = x_vec.shape
    out = np.zeros((B, n, n), dtype=np.float64)
    iu = np.triu_indices(n)
    for k in range(B):
        m = np.zeros((n, n), dtype=np.float64)
        m[iu] = x_vec[k]
        m = m + m.T
        m[np.diag_indices(n)] /= 2.0
        U, S, _ = np.linalg.svd(m)
        out[k] = U @ np.diag(np.exp(S)) @ U.T
    return out


if __name__ == "__main__":
    key = jax.random.PRNGKey(0)
    k1, k2 = jax.random.split(key)

    # --- small-n lane-dense VPU path (n=8, B=256 -> multi-step, lane-dense grid) ---
    n = 8
    B = 256
    d = n * (n + 1) // 2
    x = jax.random.normal(k1, (B, d), dtype=jnp.float32)
    fwd = jax.jit(functools.partial(spd_untangent_space, n=n, unvectorize=True))
    out = jax.block_until_ready(fwd(x))
    ref = _numpy_reference(np.asarray(x, dtype=np.float64), n)
    np.testing.assert_allclose(np.asarray(out, dtype=np.float64), ref, rtol=2e-3, atol=2e-3)

    # --- larger-n MXU path (n=48 > 32, B=16 -> 2 grid steps) ---
    n2 = 48
    B2 = 16
    d2 = n2 * (n2 + 1) // 2
    x2 = 0.1 * jax.random.normal(k2, (B2, d2), dtype=jnp.float32)
    fwd2 = jax.jit(functools.partial(spd_untangent_space, n=n2, unvectorize=True))
    out2 = jax.block_until_ready(fwd2(x2))
    ref2 = _numpy_reference(np.asarray(x2, dtype=np.float64), n2)
    np.testing.assert_allclose(np.asarray(out2, dtype=np.float64), ref2, rtol=2e-3, atol=2e-3)

    print("KERNEL_OK")
</pallas_src>

<mosaic_0001>
module attributes {stable_mosaic.version = 11 : i64} {
  func.func @_recon_lane_dense_kernel(%arg0: i32, %arg1: memref<8x8x128xf32, #tpu.memory_space<vmem>>, %arg2: memref<8x128xf32, #tpu.memory_space<vmem>>, %arg3: memref<8x8x128xf32, #tpu.memory_space<vmem>>) attributes {dimension_semantics = [#tpu.dimension_semantics<parallel>], iteration_bounds = array<i64: 2>, scalar_prefetch = 0 : i64, scratch_operands = 0 : i64, tpu.core_type = #tpu.core_type<tc>, window_params = [{transform_indices = @transform_0, window_bounds = array<i64: 8, 8, 128>}, {transform_indices = @transform_1, window_bounds = array<i64: 8, 128>}, {transform_indices = @transform_2, window_bounds = array<i64: 8, 8, 128>}]} {
    %c0 = arith.constant 0 : index
    %c0_0 = arith.constant 0 : index
    %0 = vector.load %arg2[%c0, %c0_0] : memref<8x128xf32, #tpu.memory_space<vmem>>, vector<8x128xf32>
    %1 = math.absf %0 : vector<8x128xf32>
    %2 = math.exp %1 : vector<8x128xf32>
    %c0_1 = arith.constant 0 : index
    %c0_2 = arith.constant 0 : index
    %c0_3 = arith.constant 0 : index
    %3 = vector.load %arg1[%c0_1, %c0_2, %c0_3] : memref<8x8x128xf32, #tpu.memory_space<vmem>>, vector<8x1x128xf32>
    %4 = vector.shape_cast %3 : vector<8x1x128xf32> to vector<8x128xf32>
    %5 = vector.extract_strided_slice %2 {offsets = [0, 0], sizes = [1, 128], strides = [1, 1]} : vector<8x128xf32> to vector<1x128xf32>
    %6 = vector.shape_cast %5 : vector<1x128xf32> to vector<128xf32>
    %7 = vector.shape_cast %6 : vector<128xf32> to vector<1x128xf32>
    %8 = vector.broadcast %7 : vector<1x128xf32> to vector<8x128xf32>
    %9 = arith.mulf %4, %8 : vector<8x128xf32>
    %10 = vector.shape_cast %9 : vector<8x128xf32> to vector<8x1x128xf32>
    %11 = vector.shape_cast %4 : vector<8x128xf32> to vector<1x8x128xf32>
    %12 = vector.broadcast %10 : vector<8x1x128xf32> to vector<8x8x128xf32>
    %13 = vector.broadcast %11 : vector<1x8x128xf32> to vector<8x8x128xf32>
    %14 = arith.mulf %12, %13 : vector<8x8x128xf32>
    %c0_4 = arith.constant 0 : index
    %c1 = arith.constant 1 : index
    %c0_5 = arith.constant 0 : index
    %15 = vector.load %arg1[%c0_4, %c1, %c0_5] : memref<8x8x128xf32, #tpu.memory_space<vmem>>, vector<8x1x128xf32>
    %16 = vector.shape_cast %15 : vector<8x1x128xf32> to vector<8x128xf32>
    %17 = vector.extract_strided_slice %2 {offsets = [1, 0], sizes = [1, 128], strides = [1, 1]} : vector<8x128xf32> to vector<1x128xf32>
    %18 = vector.shape_cast %17 : vector<1x128xf32> to vector<128xf32>
    %19 = vector.shape_cast %18 : vector<128xf32> to vector<1x128xf32>
    %20 = vector.broadcast %19 : vector<1x128xf32> to vector<8x128xf32>
    %21 = arith.mulf %16, %20 : vector<8x128xf32>
    %22 = vector.shape_cast %21 : vector<8x128xf32> to vector<8x1x128xf32>
    %23 = vector.shape_cast %16 : vector<8x128xf32> to vector<1x8x128xf32>
    %24 = vector.broadcast %22 : vector<8x1x128xf32> to vector<8x8x128xf32>
    %25 = vector.broadcast %23 : vector<1x8x128xf32> to vector<8x8x128xf32>
    %26 = arith.mulf %24, %25 : vector<8x8x128xf32>
    %27 = arith.addf %14, %26 : vector<8x8x128xf32>
    %c0_6 = arith.constant 0 : index
    %c2 = arith.constant 2 : index
    %c0_7 = arith.constant 0 : index
    %28 = vector.load %arg1[%c0_6, %c2, %c0_7] : memref<8x8x128xf32, #tpu.memory_space<vmem>>, vector<8x1x128xf32>
    %29 = vector.shape_cast %28 : vector<8x1x128xf32> to vector<8x128xf32>
    %30 = vector.extract_strided_slice %2 {offsets = [2, 0], sizes = [1, 128], strides = [1, 1]} : vector<8x128xf32> to vector<1x128xf32>
    %31 = vector.shape_cast %30 : vector<1x128xf32> to vector<128xf32>
    %32 = vector.shape_cast %31 : vector<128xf32> to vector<1x128xf32>
    %33 = vector.broadcast %32 : vector<1x128xf32> to vector<8x128xf32>
    %34 = arith.mulf %29, %33 : vector<8x128xf32>
    %35 = vector.shape_cast %34 : vector<8x128xf32> to vector<8x1x128xf32>
    %36 = vector.shape_cast %29 : vector<8x128xf32> to vector<1x8x128xf32>
    %37 = vector.broadcast %35 : vector<8x1x128xf32> to vector<8x8x128xf32>
    %38 = vector.broadcast %36 : vector<1x8x128xf32> to vector<8x8x128xf32>
    %39 = arith.mulf %37, %38 : vector<8x8x128xf32>
    %40 = arith.addf %27, %39 : vector<8x8x128xf32>
    %c0_8 = arith.constant 0 : index
    %c3 = arith.constant 3 : index
    %c0_9 = arith.constant 0 : index
    %41 = vector.load %arg1[%c0_8, %c3, %c0_9] : memref<8x8x128xf32, #tpu.memory_space<vmem>>, vector<8x1x128xf32>
    %42 = vector.shape_cast %41 : vector<8x1x128xf32> to vector<8x128xf32>
    %43 = vector.extract_strided_slice %2 {offsets = [3, 0], sizes = [1, 128], strides = [1, 1]} : vector<8x128xf32> to vector<1x128xf32>
    %44 = vector.shape_cast %43 : vector<1x128xf32> to vector<128xf32>
    %45 = vector.shape_cast %44 : vector<128xf32> to vector<1x128xf32>
    %46 = vector.broadcast %45 : vector<1x128xf32> to vector<8x128xf32>
    %47 = arith.mulf %42, %46 : vector<8x128xf32>
    %48 = vector.shape_cast %47 : vector<8x128xf32> to vector<8x1x128xf32>
    %49 = vector.shape_cast %42 : vector<8x128xf32> to vector<1x8x128xf32>
    %50 = vector.broadcast %48 : vector<8x1x128xf32> to vector<8x8x128xf32>
    %51 = vector.broadcast %49 : vector<1x8x128xf32> to vector<8x8x128xf32>
    %52 = arith.mulf %50, %51 : vector<8x8x128xf32>
    %53 = arith.addf %40, %52 : vector<8x8x128xf32>
    %c0_10 = arith.constant 0 : index
    %c4 = arith.constant 4 : index
    %c0_11 = arith.constant 0 : index
    %54 = vector.load %arg1[%c0_10, %c4, %c0_11] : memref<8x8x128xf32, #tpu.memory_space<vmem>>, vector<8x1x128xf32>
    %55 = vector.shape_cast %54 : vector<8x1x128xf32> to vector<8x128xf32>
    %56 = vector.extract_strided_slice %2 {offsets = [4, 0], sizes = [1, 128], strides = [1, 1]} : vector<8x128xf32> to vector<1x128xf32>
    %57 = vector.shape_cast %56 : vector<1x128xf32> to vector<128xf32>
    %58 = vector.shape_cast %57 : vector<128xf32> to vector<1x128xf32>
    %59 = vector.broadcast %58 : vector<1x128xf32> to vector<8x128xf32>
    %60 = arith.mulf %55, %59 : vector<8x128xf32>
    %61 = vector.shape_cast %60 : vector<8x128xf32> to vector<8x1x128xf32>
    %62 = vector.shape_cast %55 : vector<8x128xf32> to vector<1x8x128xf32>
    %63 = vector.broadcast %61 : vector<8x1x128xf32> to vector<8x8x128xf32>
    %64 = vector.broadcast %62 : vector<1x8x128xf32> to vector<8x8x128xf32>
    %65 = arith.mulf %63, %64 : vector<8x8x128xf32>
    %66 = arith.addf %53, %65 : vector<8x8x128xf32>
    %c0_12 = arith.constant 0 : index
    %c5 = arith.constant 5 : index
    %c0_13 = arith.constant 0 : index
    %67 = vector.load %arg1[%c0_12, %c5, %c0_13] : memref<8x8x128xf32, #tpu.memory_space<vmem>>, vector<8x1x128xf32>
    %68 = vector.shape_cast %67 : vector<8x1x128xf32> to vector<8x128xf32>
    %69 = vector.extract_strided_slice %2 {offsets = [5, 0], sizes = [1, 128], strides = [1, 1]} : vector<8x128xf32> to vector<1x128xf32>
    %70 = vector.shape_cast %69 : vector<1x128xf32> to vector<128xf32>
    %71 = vector.shape_cast %70 : vector<128xf32> to vector<1x128xf32>
    %72 = vector.broadcast %71 : vector<1x128xf32> to vector<8x128xf32>
    %73 = arith.mulf %68, %72 : vector<8x128xf32>
    %74 = vector.shape_cast %73 : vector<8x128xf32> to vector<8x1x128xf32>
    %75 = vector.shape_cast %68 : vector<8x128xf32> to vector<1x8x128xf32>
    %76 = vector.broadcast %74 : vector<8x1x128xf32> to vector<8x8x128xf32>
    %77 = vector.broadcast %75 : vector<1x8x128xf32> to vector<8x8x128xf32>
    %78 = arith.mulf %76, %77 : vector<8x8x128xf32>
    %79 = arith.addf %66, %78 : vector<8x8x128xf32>
    %c0_14 = arith.constant 0 : index
    %c6 = arith.constant 6 : index
    %c0_15 = arith.constant 0 : index
    %80 = vector.load %arg1[%c0_14, %c6, %c0_15] : memref<8x8x128xf32, #tpu.memory_space<vmem>>, vector<8x1x128xf32>
    %81 = vector.shape_cast %80 : vector<8x1x128xf32> to vector<8x128xf32>
    %82 = vector.extract_strided_slice %2 {offsets = [6, 0], sizes = [1, 128], strides = [1, 1]} : vector<8x128xf32> to vector<1x128xf32>
    %83 = vector.shape_cast %82 : vector<1x128xf32> to vector<128xf32>
    %84 = vector.shape_cast %83 : vector<128xf32> to vector<1x128xf32>
    %85 = vector.broadcast %84 : vector<1x128xf32> to vector<8x128xf32>
    %86 = arith.mulf %81, %85 : vector<8x128xf32>
    %87 = vector.shape_cast %86 : vector<8x128xf32> to vector<8x1x128xf32>
    %88 = vector.shape_cast %81 : vector<8x128xf32> to vector<1x8x128xf32>
    %89 = vector.broadcast %87 : vector<8x1x128xf32> to vector<8x8x128xf32>
    %90 = vector.broadcast %88 : vector<1x8x128xf32> to vector<8x8x128xf32>
    %91 = arith.mulf %89, %90 : vector<8x8x128xf32>
    %92 = arith.addf %79, %91 : vector<8x8x128xf32>
    %c0_16 = arith.constant 0 : index
    %c7 = arith.constant 7 : index
    %c0_17 = arith.constant 0 : index
    %93 = vector.load %arg1[%c0_16, %c7, %c0_17] : memref<8x8x128xf32, #tpu.memory_space<vmem>>, vector<8x1x128xf32>
    %94 = vector.shape_cast %93 : vector<8x1x128xf32> to vector<8x128xf32>
    %95 = vector.extract_strided_slice %2 {offsets = [7, 0], sizes = [1, 128], strides = [1, 1]} : vector<8x128xf32> to vector<1x128xf32>
    %96 = vector.shape_cast %95 : vector<1x128xf32> to vector<128xf32>
    %97 = vector.shape_cast %96 : vector<128xf32> to vector<1x128xf32>
    %98 = vector.broadcast %97 : vector<1x128xf32> to vector<8x128xf32>
    %99 = arith.mulf %94, %98 : vector<8x128xf32>
    %100 = vector.shape_cast %99 : vector<8x128xf32> to vector<8x1x128xf32>
    %101 = vector.shape_cast %94 : vector<8x128xf32> to vector<1x8x128xf32>
    %102 = vector.broadcast %100 : vector<8x1x128xf32> to vector<8x8x128xf32>
    %103 = vector.broadcast %101 : vector<1x8x128xf32> to vector<8x8x128xf32>
    %104 = arith.mulf %102, %103 : vector<8x8x128xf32>
    %105 = arith.addf %92, %104 : vector<8x8x128xf32>
    %c0_18 = arith.constant 0 : index
    %c0_19 = arith.constant 0 : index
    %c0_20 = arith.constant 0 : index
    %106 = vector.load %arg3[%c0_18, %c0_19, %c0_20] : memref<8x8x128xf32, #tpu.memory_space<vmem>>, vector<8x8x128xf32>
    tpu.vector_store %arg3[%c0_18, %c0_19, %c0_20], %105 {strides = array<i32>} : memref<8x8x128xf32, #tpu.memory_space<vmem>>, vector<8x8x128xf32>,
    return
  }
  func.func @transform_0(%arg0: i32) -> (i32, i32, i32) {
    %c0_i32 = arith.constant 0 : i32
    %c0_i32_0 = arith.constant 0 : i32
    %c0_i32_1 = arith.constant 0 : i32
    return %c0_i32, %c0_i32_0, %arg0 : i32, i32, i32
  }
  func.func @transform_1(%arg0: i32) -> (i32, i32) {
    %c0_i32 = arith.constant 0 : i32
    %c0_i32_0 = arith.constant 0 : i32
    return %c0_i32, %arg0 : i32, i32
  }
  func.func @transform_2(%arg0: i32) -> (i32, i32, i32) {
    %c0_i32 = arith.constant 0 : i32
    %c0_i32_0 = arith.constant 0 : i32
    %c0_i32_1 = arith.constant 0 : i32
    return %c0_i32, %c0_i32_0, %arg0 : i32, i32, i32
  }
}

</mosaic_0001>

<llo_original>
// kernel: custom-call.2
$region0: #{custom-call.2}
  %s0 = inlined_call_operand.vmem [shape: f32[256,4,4], index: 0, kind: input, shape index: {}]
  %s1 = inlined_call_operand.vmem [shape: f32[256,4,4], index: 1, kind: input, shape index: {}]
  %s2 = inlined_call_operand.vmem [shape: f32[256,4,4], index: 2, kind: input, shape index: {}]
  %s3 = inlined_call_operand.vmem [shape: f32[256,4,4], index: 3, kind: input, shape index: {}]
  %s4 = inlined_call_operand.vmem [shape: f32[256,4], index: 4, kind: output, shape index: {0}]
  %s5 = inlined_call_operand.vmem [shape: f32[256,4], index: 5, kind: output, shape index: {1}]
  %s6 = inlined_call_operand.vmem [shape: f32[256,4,4], index: 6, kind: output, shape index: {2}]
  %s7 = inlined_call_operand.vmem [shape: f32[256,4,4], index: 7, kind: output, shape index: {3}]
  %s8 = inlined_call_operand.vmem [shape: f32[256,4,4], index: 8, kind: output, shape index: {4}]
  %s9 = inlined_call_operand.vmem [shape: f32[256,4,4], index: 9, kind: output, shape index: {5}]
  %10 = xla_tuple %s4, %s5, %s6, %s7, %s8, %s9
  $region1: #{custom-call.2} parent=0
    #allocation0 [shape = 'u8[4096]{0}', space=vmem, size = 0x1000, scoped, tag = 'operand span for operand 0']
    #allocation1 [shape = 'u8[4096]{0}', space=vmem, size = 0x1000, scoped, tag = 'packed  for operand 0']
    #allocation2 [shape = 'u8[4096]{0}', space=vmem, size = 0x1000, scoped, tag = 'operand span for operand 1']
    #allocation3 [shape = 'u8[4096]{0}', space=vmem, size = 0x1000, scoped, tag = 'packed  for operand 1']
    #allocation4 [shape = 'u8[4096]{0}', space=vmem, size = 0x1000, scoped, tag = 'operand span for operand 2']
    #allocation5 [shape = 'u8[4096]{0}', space=vmem, size = 0x1000, scoped, tag = 'packed  for operand 2']
    #allocation6 [shape = 'u8[4096]{0}', space=vmem, size = 0x1000, scoped, tag = 'operand span for operand 3']
    #allocation7 [shape = 'u8[4096]{0}', space=vmem, size = 0x1000, scoped, tag = 'packed  for operand 3']
    #allocation8 [shape = 'u8[8192]{0}', space=vmem, size = 0x2000, scoped, tag = 'operand span for operand 4']
    #allocation9 [shape = 'u8[8192]{0}', space=vmem, size = 0x2000, scoped, tag = 'operand span for operand 5']
    #allocation10 [shape = 'u8[4096]{0}', space=vmem, size = 0x1000, scoped, tag = 'operand span for operand 6']
    #allocation11 [shape = 'u8[4096]{0}', space=vmem, size = 0x1000, scoped, tag = 'packed  for operand 6']
    #allocation12 [shape = 'u8[4096]{0}', space=vmem, size = 0x1000, scoped, tag = 'operand span for operand 7']
    #allocation13 [shape = 'u8[4096]{0}', space=vmem, size = 0x1000, scoped, tag = 'packed  for operand 7']
    #allocation14 [shape = 'u8[4096]{0}', space=vmem, size = 0x1000, scoped, tag = 'operand span for operand 8']
    #allocation15 [shape = 'u8[4096]{0}', space=vmem, size = 0x1000, scoped, tag = 'packed  for operand 8']
    #allocation16 [shape = 'u8[4096]{0}', space=vmem, size = 0x1000, scoped, tag = 'operand span for operand 9']
    #allocation17 [shape = 'u8[4096]{0}', space=vmem, size = 0x1000, scoped, tag = 'packed  for operand 9']
    loop: start=0, step=1, limit=258
    $region2: #{custom-call.2} parent=1 // loop_pre_header
      _
    $region3: #{custom-call.2} parent=1 // loop_header
      %s12 = sphi 0, %s16
      %p13 = scmp.ge.s32.totalorder %s12, 258
      %s24 = sphi 0, %s26
      %s27 = sphi 0, %s24
      %s28 = sphi 0, %s27
      %s44 = sphi 0, %s28
      %s52 = sphi 0, %s54
      %s55 = sphi 0, %s52
      %s56 = sphi 0, %s55
      %s72 = sphi 0, %s56
    $region4: #{custom-call.2} parent=1 // loop_header_branch
      %15 = sbr.rel (%p13) target = $region8
    $region5: #{custom-call.2} parent=1 // loop_body
      %s17 = ssub.s32 %s12, 1
      %s18 = ssub.s32 %s12, 2
      %s19 = sadd.s32 %s12, 1
      %s20 = sshrl.u32 %s12, 3
      %s21 = sshrl.u32 %s19, 3
      %s22 = ssub.s32 %s20, %s21
      %p23 = scmp.eq.s32.totalorder %s22, 0
      %s25 = sadd.s32 %s24, 1
      %s26 = scalar_select %p23, %s24, %s25
      %p29 = pneg %p23
      %p30 = scmp.eq.s32.totalorder %s12, 255
      %p31 = por %p29, %p30
      %p32 = scmp.ne.s32.totalorder %s24, %s27
      %p33 = scmp.eq.s32.totalorder %s12, 0
      %p34 = por %p32, %p33
      %p35 = scmp.ne.s32.totalorder %s24, %s27
      %p36 = scmp.eq.s32.totalorder %s17, 255
      %p37 = por %p35, %p36
      %p38 = scmp.ne.s32.totalorder %s27, %s28
      %p39 = scmp.eq.s32.totalorder %s17, 0
      %p40 = por %p38, %p39
      %p41 = scmp.ne.s32.totalorder %s27, %s28
      %p42 = scmp.eq.s32.totalorder %s18, 255
      %p43 = por %p41, %p42
      %p45 = scmp.ne.s32.totalorder %s28, %s44
      %p46 = scmp.eq.s32.totalorder %s18, 0
      %p47 = por %p45, %p46
      %s48 = sshrl.u32 %s12, 3
      %s49 = sshrl.u32 %s19, 3
      %s50 = ssub.s32 %s48, %s49
      %p51 = scmp.eq.s32.totalorder %s50, 0
      %s53 = sadd.s32 %s52, 1
      %s54 = scalar_select %p51, %s52, %s53
      %p57 = pneg %p51
      %p58 = scmp.eq.s32.totalorder %s12, 255
      %p59 = por %p57, %p58
      %p60 = scmp.ne.s32.totalorder %s52, %s55
      %p61 = scmp.eq.s32.totalorder %s12, 0
      %p62 = por %p60, %p61
      %p63 = scmp.ne.s32.totalorder %s52, %s55
      %p64 = scmp.eq.s32.totalorder %s17, 255
      %p65 = por %p63, %p64
      %p66 = scmp.ne.s32.totalorder %s55, %s56
      %p67 = scmp.eq.s32.totalorder %s17, 0
      %p68 = por %p66, %p67
      %p69 = scmp.ne.s32.totalorder %s55, %s56
      %p70 = scmp.eq.s32.totalorder %s18, 255
      %p71 = por %p69, %p70
      %p73 = scmp.ne.s32.totalorder %s56, %s72
      %p74 = scmp.eq.s32.totalorder %s18, 0
      %p75 = por %p73, %p74
      %p76 = scmp.le.s32.totalorder 1, %s12
      %p77 = scmp.lt.s32.totalorder %s12, 257
      %p78 = pnand %p76, %p77
      %p79 = pneg %p78
      // Predicated region
      $region9: #{custom-call.2} parent=5 // pred_check
        _
      $region10: #{custom-call.2} parent=5 // pred_check_branch
        %81 = sbr.rel (%p78) target = $region12
      $region11: #{custom-call.2} parent=5 // pred_region
        %s82 = ssub.s32 %s12, 1
      $region12: #{custom-call.2} parent=5 // pred_fallthru
        _
      %p83 = scmp.lt.s32.totalorder %s12, 256
      // Predicated region
      $region13: #{custom-call.2} parent=5 // pred_check
        %p84 = pneg %p83
      $region14: #{custom-call.2} parent=5 // pred_check_branch
        %86 = sbr.rel (%p84) target = $region16
      $region15: #{custom-call.2} parent=5 // pred_region
        %s87 = sand.u32 %s12, 1
        %s88 = sand.u32 %s12, 1
        %s89 = smul.addr %s88, 4
        %s90 = scalar_lea.vmem [#allocation1], %s89
        %s91 = smul.addr %s12, 4
        %s92 = scalar_lea.vmem %s0, %s91
        // Predicated region
        $region17: #{custom-call.2} parent=15 // pred_check
          _
        $region18: #{custom-call.2} parent=15 // pred_check_branch
          %94 = sbr.rel (0) target = $region20
        $region19: #{custom-call.2} parent=15 // pred_region
          // Predicated region
          $region21: #{custom-call.2} parent=19 // pred_check
            _
          $region22: #{custom-call.2} parent=19 // pred_check_branch
            %96 = sbr.rel target = $region24
          $region23: #{custom-call.2} parent=19 // pred_region
            // Predicated region
            $region36: #{custom-call.2} parent=23 // pred_check
              _
            $region37: #{custom-call.2} parent=23 // pred_check_branch
              %112 = sbr.rel (0) target = $region39
            $region38: #{custom-call.2} parent=23 // pred_region
              %s114 = ssub.s32 16, 1
              loop: start=0, step=1, limit=1
              $region40: #{custom-call.2} parent=38 // loop_pre_header
                _
              $region41: #{custom-call.2} parent=38 // loop_header
                %s116 = sphi 0, %s120
                %p117 = scmp.ge.s32.totalorder %s116, 1
                %s121 = sphi %s92, %s92
                %s122 = sphi %s90, %s90
              $region42: #{custom-call.2} parent=38 // loop_header_branch
                %119 = sbr.rel (%p117) target = $region46
              $region43: #{custom-call.2} parent=38 // loop_body
                %v123 = vld [vmem:[%s121] sm:%s114]
                %124 = vst [vmem:[%s122] sm:%s114] %v123
              $region44: #{custom-call.2} parent=38 // loop_footer
                %s120 = sadd.s32 1, %s116
              $region45: #{custom-call.2} parent=38 // loop_footer_branch
                %115 = sbr.rel target = $region41
              $region46: #{custom-call.2} parent=38 // loop_exit
                _
            $region39: #{custom-call.2} parent=23 // pred_fallthru
              _
          $region24: #{custom-call.2} parent=19 // pred_fallthru
            _
          // Predicated region
          $region25: #{custom-call.2} parent=19 // pred_check
            _
          $region26: #{custom-call.2} parent=19 // pred_check_branch
            %98 = sbr.rel (0) target = $region28
          $region27: #{custom-call.2} parent=19 // pred_region
            %s100 = ssub.s32 16, 1
            loop: start=0, step=1, limit=1
            $region29: #{custom-call.2} parent=27 // loop_pre_header
              _
            $region30: #{custom-call.2} parent=27 // loop_header
              %s102 = sphi 0, %s106
              %p103 = scmp.ge.s32.totalorder %s102, 1
              %s107 = sphi %s92, %s92
              %s108 = sphi %s90, %s90
            $region31: #{custom-call.2} parent=27 // loop_header_branch
              %105 = sbr.rel (%p103) target = $region35
            $region32: #{custom-call.2} parent=27 // loop_body
              %v109 = vld [vmem:[%s107] sm:%s100]
              %110 = vst [vmem:[%s108] sm:%s100] %v109
            $region33: #{custom-call.2} parent=27 // loop_footer
              %s106 = sadd.s32 1, %s102
            $region34: #{custom-call.2} parent=27 // loop_footer_branch
              %101 = sbr.rel target = $region30
            $region35: #{custom-call.2} parent=27 // loop_exit
              _
          $region28: #{custom-call.2} parent=19 // pred_fallthru
            _
        $region20: #{custom-call.2} parent=15 // pred_fallthru
          _
        %125 = vnop
        %s126 = sand.u32 %s12, 1
        %s127 = sand.u32 %s12, 1
        %s128 = smul.addr %s127, 4
        %s129 = scalar_lea.vmem [#allocation3], %s128
        %s130 = smul.addr %s12, 4
        %s131 = scalar_lea.vmem %s1, %s130
        // Predicated region
        $region47: #{custom-call.2} parent=15 // pred_check
          _
        $region48: #{custom-call.2} parent=15 // pred_check_branch
          %133 = sbr.rel (0) target = $region50
        $region49: #{custom-call.2} parent=15 // pred_region
          // Predicated region
          $region51: #{custom-call.2} parent=49 // pred_check
            _
          $region52: #{custom-call.2} parent=49 // pred_check_branch
            %135 = sbr.rel target = $region54
          $region53: #{custom-call.2} parent=49 // pred_region
            // Predicated region
            $region66: #{custom-call.2} parent=53 // pred_check
              _
            $region67: #{custom-call.2} parent=53 // pred_check_branch
              %151 = sbr.rel (0) target = $region69
            $region68: #{custom-call.2} parent=53 // pred_region
              %s153 = ssub.s32 16, 1
              loop: start=0, step=1, limit=1
              $region70: #{custom-call.2} parent=68 // loop_pre_header
                _
              $region71: #{custom-call.2} parent=68 // loop_header
                %s155 = sphi 0, %s159
                %p156 = scmp.ge.s32.totalorder %s155, 1
                %s160 = sphi %s131, %s131
                %s161 = sphi %s129, %s129
              $region72: #{custom-call.2} parent=68 // loop_header_branch
                %158 = sbr.rel (%p156) target = $region76
              $region73: #{custom-call.2} parent=68 // loop_body
                %v162 = vld [vmem:[%s160] sm:%s153]
                %163 = vst [vmem:[%s161] sm:%s153] %v162
              $region74: #{custom-call.2} parent=68 // loop_footer
                %s159 = sadd.s32 1, %s155
              $region75: #{custom-call.2} parent=68 // loop_footer_branch
                %154 = sbr.rel target = $region71
              $region76: #{custom-call.2} parent=68 // loop_exit
                _
            $region69: #{custom-call.2} parent=53 // pred_fallthru
              _
          $region54: #{custom-call.2} parent=49 // pred_fallthru
            _
          // Predicated region
          $region55: #{custom-call.2} parent=49 // pred_check
            _
          $region56: #{custom-call.2} parent=49 // pred_check_branch
            %137 = sbr.rel (0) target = $region58
          $region57: #{custom-call.2} parent=49 // pred_region
            %s139 = ssub.s32 16, 1
            loop: start=0, step=1, limit=1
            $region59: #{custom-call.2} parent=57 // loop_pre_header
              _
            $region60: #{custom-call.2} parent=57 // loop_header
              %s141 = sphi 0, %s145
              %p142 = scmp.ge.s32.totalorder %s141, 1
              %s146 = sphi %s131, %s131
              %s147 = sphi %s129, %s129
            $region61: #{custom-call.2} parent=57 // loop_header_branch
              %144 = sbr.rel (%p142) target = $region65
            $region62: #{custom-call.2} parent=57 // loop_body
              %v148 = vld [vmem:[%s146] sm:%s139]
              %149 = vst [vmem:[%s147] sm:%s139] %v148
            $region63: #{custom-call.2} parent=57 // loop_footer
              %s145 = sadd.s32 1, %s141
            $region64: #{custom-call.2} parent=57 // loop_footer_branch
              %140 = sbr.rel target = $region60
            $region65: #{custom-call.2} parent=57 // loop_exit
              _
          $region58: #{custom-call.2} parent=49 // pred_fallthru
            _
        $region50: #{custom-call.2} parent=15 // pred_fallthru
          _
        %164 = vnop
        %s165 = sand.u32 %s12, 1
        %s166 = sand.u32 %s12, 1
        %s167 = smul.addr %s166, 4
        %s168 = scalar_lea.vmem [#allocation5], %s167
        %s169 = smul.addr %s12, 4
        %s170 = scalar_lea.vmem %s2, %s169
        // Predicated region
        $region77: #{custom-call.2} parent=15 // pred_check
          _
        $region78: #{custom-call.2} parent=15 // pred_check_branch
          %172 = sbr.rel (0) target = $region80
        $region79: #{custom-call.2} parent=15 // pred_region
          // Predicated region
          $region81: #{custom-call.2} parent=79 // pred_check
            _
          $region82: #{custom-call.2} parent=79 // pred_check_branch
            %174 = sbr.rel target = $region84
          $region83: #{custom-call.2} parent=79 // pred_region
            // Predicated region
            $region96: #{custom-call.2} parent=83 // pred_check
              _
            $region97: #{custom-call.2} parent=83 // pred_check_branch
              %190 = sbr.rel (0) target = $region99
            $region98: #{custom-call.2} parent=83 // pred_region
              %s192 = ssub.s32 16, 1
              loop: start=0, step=1, limit=1
              $region100: #{custom-call.2} parent=98 // loop_pre_header
                _
              $region101: #{custom-call.2} parent=98 // loop_header
                %s194 = sphi 0, %s198
                %p195 = scmp.ge.s32.totalorder %s194, 1
                %s199 = sphi %s170, %s170
                %s200 = sphi %s168, %s168
              $region102: #{custom-call.2} parent=98 // loop_header_branch
                %197 = sbr.rel (%p195) target = $region106
              $region103: #{custom-call.2} parent=98 // loop_body
                %v201 = vld [vmem:[%s199] sm:%s192]
                %202 = vst [vmem:[%s200] sm:%s192] %v201
              $region104: #{custom-call.2} parent=98 // loop_footer
                %s198 = sadd.s32 1, %s194
              $region105: #{custom-call.2} parent=98 // loop_footer_branch
                %193 = sbr.rel target = $region101
              $region106: #{custom-call.2} parent=98 // loop_exit
                _
            $region99: #{custom-call.2} parent=83 // pred_fallthru
              _
          $region84: #{custom-call.2} parent=79 // pred_fallthru
            _
          // Predicated region
          $region85: #{custom-call.2} parent=79 // pred_check
            _
          $region86: #{custom-call.2} parent=79 // pred_check_branch
            %176 = sbr.rel (0) target = $region88
          $region87: #{custom-call.2} parent=79 // pred_region
            %s178 = ssub.s32 16, 1
            loop: start=0, step=1, limit=1
            $region89: #{custom-call.2} parent=87 // loop_pre_header
              _
            $region90: #{custom-call.2} parent=87 // loop_header
              %s180 = sphi 0, %s184
              %p181 = scmp.ge.s32.totalorder %s180, 1
              %s185 = sphi %s170, %s170
              %s186 = sphi %s168, %s168
            $region91: #{custom-call.2} parent=87 // loop_header_branch
              %183 = sbr.rel (%p181) target = $region95
            $region92: #{custom-call.2} parent=87 // loop_body
              %v187 = vld [vmem:[%s185] sm:%s178]
              %188 = vst [vmem:[%s186] sm:%s178] %v187
            $region93: #{custom-call.2} parent=87 // loop_footer
              %s184 = sadd.s32 1, %s180
            $region94: #{custom-call.2} parent=87 // loop_footer_branch
              %179 = sbr.rel target = $region90
            $region95: #{custom-call.2} parent=87 // loop_exit
              _
          $region88: #{custom-call.2} parent=79 // pred_fallthru
            _
        $region80: #{custom-call.2} parent=15 // pred_fallthru
          _
        %203 = vnop
        %s204 = sand.u32 %s12, 1
        %s205 = sand.u32 %s12, 1
        %s206 = smul.addr %s205, 4
        %s207 = scalar_lea.vmem [#allocation7], %s206
        %s208 = smul.addr %s12, 4
        %s209 = scalar_lea.vmem %s3, %s208
        // Predicated region
        $region107: #{custom-call.2} parent=15 // pred_check
          _
        $region108: #{custom-call.2} parent=15 // pred_check_branch
          %211 = sbr.rel (0) target = $region110
        $region109: #{custom-call.2} parent=15 // pred_region
          // Predicated region
          $region111: #{custom-call.2} parent=109 // pred_check
            _
          $region112: #{custom-call.2} parent=109 // pred_check_branch
            %213 = sbr.rel target = $region114
          $region113: #{custom-call.2} parent=109 // pred_region
            // Predicated region
            $region126: #{custom-call.2} parent=113 // pred_check
              _
            $region127: #{custom-call.2} parent=113 // pred_check_branch
              %229 = sbr.rel (0) target = $region129
            $region128: #{custom-call.2} parent=113 // pred_region
              %s231 = ssub.s32 16, 1
              loop: start=0, step=1, limit=1
              $region130: #{custom-call.2} parent=128 // loop_pre_header
                _
              $region131: #{custom-call.2} parent=128 // loop_header
                %s233 = sphi 0, %s237
                %p234 = scmp.ge.s32.totalorder %s233, 1
                %s238 = sphi %s209, %s209
                %s239 = sphi %s207, %s207
              $region132: #{custom-call.2} parent=128 // loop_header_branch
                %236 = sbr.rel (%p234) target = $region136
              $region133: #{custom-call.2} parent=128 // loop_body
                %v240 = vld [vmem:[%s238] sm:%s231]
                %241 = vst [vmem:[%s239] sm:%s231] %v240
              $region134: #{custom-call.2} parent=128 // loop_footer
                %s237 = sadd.s32 1, %s233
              $region135: #{custom-call.2} parent=128 // loop_footer_branch
                %232 = sbr.rel target = $region131
              $region136: #{custom-call.2} parent=128 // loop_exit
                _
            $region129: #{custom-call.2} parent=113 // pred_fallthru
              _
          $region114: #{custom-call.2} parent=109 // pred_fallthru
            _
          // Predicated region
          $region115: #{custom-call.2} parent=109 // pred_check
            _
          $region116: #{custom-call.2} parent=109 // pred_check_branch
            %215 = sbr.rel (0) target = $region118
          $region117: #{custom-call.2} parent=109 // pred_region
            %s217 = ssub.s32 16, 1
            loop: start=0, step=1, limit=1
            $region119: #{custom-call.2} parent=117 // loop_pre_header
              _
            $region120: #{custom-call.2} parent=117 // loop_header
              %s219 = sphi 0, %s223
              %p220 = scmp.ge.s32.totalorder %s219, 1
              %s224 = sphi %s209, %s209
              %s225 = sphi %s207, %s207
            $region121: #{custom-call.2} parent=117 // loop_header_branch
              %222 = sbr.rel (%p220) target = $region125
            $region122: #{custom-call.2} parent=117 // loop_body
              %v226 = vld [vmem:[%s224] sm:%s217]
              %227 = vst [vmem:[%s225] sm:%s217] %v226
            $region123: #{custom-call.2} parent=117 // loop_footer
              %s223 = sadd.s32 1, %s219
            $region124: #{custom-call.2} parent=117 // loop_footer_branch
              %218 = sbr.rel target = $region120
            $region125: #{custom-call.2} parent=117 // loop_exit
              _
          $region118: #{custom-call.2} parent=109 // pred_fallthru
            _
        $region110: #{custom-call.2} parent=15 // pred_fallthru
          _
        %242 = vnop
      $region16: #{custom-call.2} parent=5 // pred_fallthru
        _
      %p243 = scmp.le.s32.totalorder 1, %s12
      %p244 = scmp.lt.s32.totalorder %s12, 257
      %p245 = pnand %p243, %p244
      %p246 = pneg %p245
      // Predicated region
      $region137: #{custom-call.2} parent=5 // pred_check
        _
      $region138: #{custom-call.2} parent=5 // pred_check_branch
        %248 = sbr.rel (%p245) target = $region140
      $region139: #{custom-call.2} parent=5 // pred_region
        #allocation18 [shape = 'f32[4,4]{1,0}', space=vmem, size = 0x1000, scoped, tag = 'a top-left matrix']
        #allocation19 [shape = 'f32[4,4]{1,0}', space=vmem, size = 0x1000, scoped, tag = 'a top-right matrix']
        #allocation20 [shape = 'f32[4,4]{1,0}', space=vmem, size = 0x1000, scoped, tag = 'a bottom-left matrix']
        #allocation21 [shape = 'f32[4,4]{1,0}', space=vmem, size = 0x1000, scoped, tag = 'a bottom-right matrix']
        %s249 = ssub.s32 %s12, 1
        %s250 = sand.u32 %s17, 1
        %s251 = sand.u32 %s17, 1
        %s252 = smul.addr %s251, 4
        %s253 = scalar_lea.vmem [#allocation1], %s252
        %s254 = sand.u32 %s17, 1
        %s255 = sand.u32 %s17, 1
        %s256 = smul.addr %s255, 4
        %s257 = scalar_lea.vmem [#allocation3], %s256
        %s258 = sand.u32 %s17, 1
        %s259 = sand.u32 %s17, 1
        %s260 = smul.addr %s259, 4
        %s261 = scalar_lea.vmem [#allocation5], %s260
        %s262 = sand.u32 %s17, 1
        %s263 = sand.u32 %s17, 1
        %s264 = smul.addr %s263, 4
        %s265 = scalar_lea.vmem [#allocation7], %s264
        %s266 = sand.u32 %s17, 1
        %s267 = sand.u32 %s17, 1
        %s268 = smul.addr %s267, 4
        %s269 = scalar_lea.vmem [#allocation1], %s268
        %s270 = sand.u32 %s17, 1
        %s271 = sand.u32 %s17, 1
        %s272 = smul.addr %s271, 4
        %s273 = scalar_lea.vmem [#allocation3], %s272
        %s274 = sand.u32 %s17, 1
        %s275 = sand.u32 %s17, 1
        %s276 = smul.addr %s275, 4
        %s277 = scalar_lea.vmem [#allocation5], %s276
        %s278 = sand.u32 %s17, 1
        %s279 = sand.u32 %s17, 1
        %s280 = smul.addr %s279, 4
        %s281 = scalar_lea.vmem [#allocation7], %s280
        %p282 = pneg %p40
        %p283 = pneg %p37
        %s284 = sand.u32 %s27, 1
        %s285 = sand.u32 %s27, 1
        %s286 = smul.addr %s285, 8
        %s287 = scalar_lea.vmem [#allocation8], %s286
        %p288 = pneg %p68
        %p289 = pneg %p65
        %s290 = sand.u32 %s55, 1
        %s291 = sand.u32 %s55, 1
        %s292 = smul.addr %s291, 8
        %s293 = scalar_lea.vmem [#allocation9], %s292
        %s294 = sand.u32 %s17, 1
        %s295 = sand.u32 %s17, 1
        %s296 = smul.addr %s295, 4
        %s297 = scalar_lea.vmem [#allocation11], %s296
        %s298 = sand.u32 %s17, 1
        %s299 = sand.u32 %s17, 1
        %s300 = smul.addr %s299, 4
        %s301 = scalar_lea.vmem [#allocation13], %s300
        %s302 = sand.u32 %s17, 1
        %s303 = sand.u32 %s17, 1
        %s304 = smul.addr %s303, 4
        %s305 = scalar_lea.vmem [#allocation15], %s304
        %s306 = sand.u32 %s17, 1
        %s307 = sand.u32 %s17, 1
        %s308 = smul.addr %s307, 4
        %s309 = scalar_lea.vmem [#allocation17], %s308
        %s311 = ssub.s32 16, 1
        %v312 = vld [vmem:[%s269] sm:%s311]
        %313 = vst [vmem:[#allocation0] sm:%s311] %v312
        %s315 = ssub.s32 16, 1
        %v316 = vld [vmem:[%s273] sm:%s315]
        %317 = vst [vmem:[#allocation2] sm:%s315] %v316
        %s319 = ssub.s32 16, 1
        %v320 = vld [vmem:[%s277] sm:%s319]
        %321 = vst [vmem:[#allocation4] sm:%s319] %v320
        %s323 = ssub.s32 16, 1
        %v324 = vld [vmem:[%s281] sm:%s323]
        %325 = vst [vmem:[#allocation6] sm:%s323] %v324
        %s326 = sshrl.u32 %s17, 3
        %s327 = sshrl.u32 %s17, 3
        %s328 = smov [#allocation18]
        %v329 = vld [vmem:[#allocation0] sm:$0xff]
        %330 = vst [vmem:[%s328] sm:$0xff] %v329
        %s331 = smov [#allocation19]
        %v332 = vld [vmem:[#allocation2] sm:$0xff]
        %333 = vst [vmem:[%s331] sm:$0xff] %v332
        %s334 = smov [#allocation20]
        %v335 = vld [vmem:[#allocation4] sm:$0xff]
        %336 = vst [vmem:[%s334] sm:$0xff] %v335
        %s337 = smov [#allocation21]
        %v338 = vld [vmem:[#allocation6] sm:$0xff]
        %339 = vst [vmem:[%s337] sm:$0xff] %v338
        %340 = vst [vmem:[#allocation10] sm:$0xff] 0.0
        %341 = vst [vmem:[#allocation12] sm:$0xff] 0.0
        %342 = vst [vmem:[#allocation14] sm:$0xff] 0.0
        %343 = vst [vmem:[#allocation16] sm:$0xff] 0.0
        %s344 = smov [#allocation10]
        %v345 = vlaneseq
        %v346 = vand.u32 %v345, 127
        %v347 = vmov %v346
        %v348 = vlaneseq
        %v349 = vshrl.u32 %v348, 7
        %v350 = vmov %v349
        %v351 = vld [vmem:[%s344] sm:$0xf]
        %vm354 = vcmp.eq.s32.totalorder %v350, %v347
        %v355 = vsel %vm354, 1.0, %v351
        %356 = vst [vmem:[%s344] sm:$0xf] %v355
        %s357 = smov [#allocation16]
        %v358 = vlaneseq
        %v359 = vand.u32 %v358, 127
        %v360 = vmov %v359
        %v361 = vlaneseq
        %v362 = vshrl.u32 %v361, 7
        %v363 = vmov %v362
        %v364 = vld [vmem:[%s357] sm:$0xf]
        %vm367 = vcmp.eq.s32.totalorder %v363, %v360
        %v368 = vsel %vm367, 1.0, %v364
        %369 = vst [vmem:[%s357] sm:$0xf] %v368
        // While loop
        $region141: #{custom-call.2} parent=139 // loop_pre_header
          _
        $region142: #{custom-call.2} parent=139 // loop_header
          %s371 = sphi 0, %s953
          %v372 = vlaneseq
          %v373 = vand.u32 %v372, 127
          %v374 = vmov %v373
          %v375 = vlaneseq
          %v376 = vshrl.u32 %v375, 7
          %v377 = vmov %v376
          %s378 = smov [#allocation18]
          %v379 = vlaneseq
          %v380 = vand.u32 %v379, 127
          %vm381 = vcmp.ge.s32.totalorder %v380, 0
          %vm382 = vcmp.lt.s32.totalorder %v380, 4
          %vm383 = vmand %vm381, %vm382
          %v384 = vld [vmem:[%s378] sm:$0xf]
          %v385 = vsel %vm383, %v384, 0.0
          %v386 = vmul.f32 %v385, %v385
          %vm389 = vcmp.eq.s32.totalorder %v377, %v374
          %v390 = vsel %vm389, 0.0, %v386
          %v391 = vlaneseq
          %v392 = vand.u32 %v391, 127
          %v393 = vmov %v392
          %v394 = vlaneseq
          %v395 = vshrl.u32 %v394, 7
          %v396 = vmov %v395
          %s397 = smov [#allocation19]
          %v398 = vlaneseq
          %v399 = vand.u32 %v398, 127
          %vm400 = vcmp.ge.s32.totalorder %v399, 0
          %vm401 = vcmp.lt.s32.totalorder %v399, 4
          %vm402 = vmand %vm400, %vm401
          %v403 = vld [vmem:[%s397] sm:$0xf]
          %v404 = vsel %vm402, %v403, 0.0
          %v405 = vmul.f32 %v404, %v404
          %v406 = vadd.f32 %v390, %v405
          %v407 = vadd.f32 %v386, %v405
          %v408 = vlaneseq
          %v409 = vand.u32 %v408, 127
          %v410 = vmov %v409
          %v411 = vlaneseq
          %v412 = vshrl.u32 %v411, 7
          %v413 = vmov %v412
          %s414 = smov [#allocation20]
          %v415 = vlaneseq
          %v416 = vand.u32 %v415, 127
          %vm417 = vcmp.ge.s32.totalorder %v416, 0
          %vm418 = vcmp.lt.s32.totalorder %v416, 4
          %vm419 = vmand %vm417, %vm418
          %v420 = vld [vmem:[%s414] sm:$0xf]
          %v421 = vsel %vm419, %v420, 0.0
          %v422 = vmul.f32 %v421, %v421
          %v423 = vadd.f32 %v406, %v422
          %v424 = vadd.f32 %v407, %v422
          %v425 = vlaneseq
          %v426 = vand.u32 %v425, 127
          %v427 = vmov %v426
          %v428 = vlaneseq
          %v429 = vshrl.u32 %v428, 7
          %v430 = vmov %v429
          %s431 = smov [#allocation21]
          %v432 = vlaneseq
          %v433 = vand.u32 %v432, 127
          %vm434 = vcmp.ge.s32.totalorder %v433, 0
          %vm435 = vcmp.lt.s32.totalorder %v433, 4
          %vm436 = vmand %vm434, %vm435
          %v437 = vld [vmem:[%s431] sm:$0xf]
          %v438 = vsel %vm436, %v437, 0.0
          %v439 = vmul.f32 %v438, %v438
          %vm442 = vcmp.eq.s32.totalorder %v430, %v427
          %v443 = vsel %vm442, 0.0, %v439
          %v444 = vadd.f32 %v423, %v443
          %v445 = vadd.f32 %v424, %v439
          %446 = vadd.xlane.f32.xlu0 %v445
          %v447 = vpop.xlane.xlu0 %446
          %v448 = vrot.slane %v447, 4
          %v449 = vadd.f32 %v447, %v448
          %v450 = vrot.slane %v449, 2
          %v451 = vadd.f32 %v449, %v450
          %v452 = vrot.slane %v451, 1
          %v453 = vadd.f32 %v451, %v452
          %454 = vadd.xlane.f32.xlu0 %v444
          %v455 = vpop.xlane.xlu0 %454
          %v456 = vrot.slane %v455, 4
          %v457 = vadd.f32 %v455, %v456
          %v458 = vrot.slane %v457, 2
          %v459 = vadd.f32 %v457, %v458
          %v460 = vrot.slane %v459, 1
          %v461 = vadd.f32 %v459, %v460
          %s462 = vtos %v461
          %s463 = vtos %v453
          %s464 = smul.f32 1e-10, %s463
          %p465 = scmp.le.f32.partialorder %s462, %s464
          %p466 = scmp.ge.s32.totalorder %s371, 15
          %p467 = por %p465, %p466
        $region143: #{custom-call.2} parent=139 // loop_header_branch
          %955 = sbr.rel (%p467) target = $region147
        $region144: #{custom-call.2} parent=139 // loop_body
          loop: start=0, step=1, limit=7
          $region148: #{custom-call.2} parent=144 // loop_pre_header
            _
          $region149: #{custom-call.2} parent=144 // loop_header
            %s469 = sphi 0, %s473
            %p470 = scmp.ge.s32.totalorder %s469, 7
          $region150: #{custom-call.2} parent=144 // loop_header_branch
            %472 = sbr.rel (%p470) target = $region154
          $region151: #{custom-call.2} parent=144 // loop_body
            #allocation22 [shape = 'f32[1024]{0}', space=vmem, size = 0x1000, scoped, tag = 'a_tl_diag vmem']
            #allocation23 [shape = 'f32[1024]{0}', space=vmem, size = 0x1000, scoped, tag = 'a_tr_diag vmem']
            #allocation24 [shape = 'f32[1024]{0}', space=vmem, size = 0x1000, scoped, tag = 'a_br_diag vmem']
            #allocation25 [shape = 'f32[1024]{0}', space=vmem, size = 0x1000, scoped, tag = 'rt1 vmem']
            #allocation26 [shape = 'f32[1024]{0}', space=vmem, size = 0x1000, scoped, tag = 'rt2 vmem']
            #allocation27 [shape = 'f32[1024]{0}', space=vmem, size = 0x1000, scoped, tag = 'c vmem']
            #allocation28 [shape = 'f32[1024]{0}', space=vmem, size = 0x1000, scoped, tag = 's vmem']
            #allocation29 [shape = 'f32[4096]{0}', space=vmem, size = 0x4000, scoped, tag = 'c broadcast']
            #allocation30 [shape = 'f32[4096]{0}', space=vmem, size = 0x4000, scoped, tag = 's broadcast']
            %s474 = smov [#allocation18]
            %s475 = smov [#allocation22]
            %v476 = vlaneseq
            %v477 = vand.u32 %v476, 127
            %v478 = vmov %v477
            %v479 = vlaneseq
            %v480 = vshrl.u32 %v479, 7
            %v481 = vmov %v480
            %v482 = vld [vmem:[%s474] sm:$0xf]
            %vm485 = vcmp.eq.s32.totalorder %v481, %v478
            %v486 = vsel %vm485, %v482, 0.0
            %v487 = vrot.slane %v486, 4
            %v488 = vadd.f32 %v486, %v487
            %v489 = vrot.slane %v488, 2
            %v490 = vadd.f32 %v488, %v489
            %v491 = vrot.slane %v490, 1
            %v492 = vadd.f32 %v490, %v491
            %493 = vst [vmem:[%s475] sm:$0x1] %v492
            %s494 = smov [#allocation19]
            %s495 = smov [#allocation23]
            %v496 = vlaneseq
            %v497 = vand.u32 %v496, 127
            %v498 = vmov %v497
            %v499 = vlaneseq
            %v500 = vshrl.u32 %v499, 7
            %v501 = vmov %v500
            %v502 = vld [vmem:[%s494] sm:$0xf]
            %vm505 = vcmp.eq.s32.totalorder %v501, %v498
            %v506 = vsel %vm505, %v502, 0.0
            %v507 = vrot.slane %v506, 4
            %v508 = vadd.f32 %v506, %v507
            %v509 = vrot.slane %v508, 2
            %v510 = vadd.f32 %v508, %v509
            %v511 = vrot.slane %v510, 1
            %v512 = vadd.f32 %v510, %v511
            %513 = vst [vmem:[%s495] sm:$0x1] %v512
            %s514 = smov [#allocation21]
            %s515 = smov [#allocation24]
            %v516 = vlaneseq
            %v517 = vand.u32 %v516, 127
            %v518 = vmov %v517
            %v519 = vlaneseq
            %v520 = vshrl.u32 %v519, 7
            %v521 = vmov %v520
            %v522 = vld [vmem:[%s514] sm:$0xf]
            %vm525 = vcmp.eq.s32.totalorder %v521, %v518
            %v526 = vsel %vm525, %v522, 0.0
            %v527 = vrot.slane %v526, 4
            %v528 = vadd.f32 %v526, %v527
            %v529 = vrot.slane %v528, 2
            %v530 = vadd.f32 %v528, %v529
            %v531 = vrot.slane %v530, 1
            %v532 = vadd.f32 %v530, %v531
            %533 = vst [vmem:[%s515] sm:$0x1] %v532
            %s534 = smov [#allocation27]
            %s535 = smov [#allocation28]
            %s536 = smov [#allocation22]
            %v537 = vld [vmem:[%s536] sm:$0xff]
            %s538 = smov [#allocation23]
            %v539 = vld [vmem:[%s538] sm:$0xff]
            %s540 = smov [#allocation24]
            %v541 = vld [vmem:[%s540] sm:$0xff]
            %v542 = vsub.f32 %v541, %v537
            %v543 = vmul.f32 2.0, %v539
            %v544 = vrcp.pop %v543
            %v545 = vmul.f32 %v543, %v544
            %v546 = vsub.f32 1.0, %v545
            %v547 = vmul.f32 %v544, %v546
            %v548 = vadd.f32 %v544, %v547
            %vm549 = vweird.f32 %v543
            %vm550 = vweird.f32 %v544
            %vm551 = vmor %vm549, %vm550
            %v552 = vsel %vm551, %v544, %v548
            %v553 = vand.u32 2147483647, %v543
            %vm554 = vcmp.eq.f32.partialorder %v553, 8.507059e+37
            %v555 = vand.u32 %v543, 2147483648
            %v556 = vor.u32 1.1754944e-38, %v555
            %v557 = vsel %vm554, %v556, %v552
            %v558 = vmul.f32 %v542, %v557
            %vm559 = vcmp.ge.f32.partialorder %v558, 0.0
            %v560 = vmul.f32 %v558, %v558
            %v561 = vadd.f32 1.0, %v560
            %v562 = vrsqrt.pop %v561
            %v563 = vmul.f32 %v562, %v561
            %v564 = vmul.f32 %v563, %v562
            %v565 = vmul.f32 0.5, %v564
            %v566 = vsub.f32 1.5, %v565
            %v567 = vmul.f32 %v562, %v566
            %v568 = vmul.f32 %v561, %v567
            %vm569 = vcmp.eq.f32.partialorder %v561, inf
            %v570 = vsel %vm569, %v561, %v568
            %vm571 = vcmp.eq.f32.partialorder %v561, 0.0
            %v572 = vand.u32 %v561, 2147483648
            %v573 = vsel %vm571, %v572, %v570
            %v574 = vxor.u32 %v573, 2147483648
            %v575 = vsel %vm559, %v573, %v574
            %v576 = vadd.f32 %v558, %v575
            %v577 = vrcp.pop %v576
            %v578 = vmul.f32 %v576, %v577
            %v579 = vsub.f32 1.0, %v578
            %v580 = vmul.f32 %v577, %v579
            %v581 = vadd.f32 %v577, %v580
            %vm582 = vweird.f32 %v576
            %vm583 = vweird.f32 %v577
            %vm584 = vmor %vm582, %vm583
            %v585 = vsel %vm584, %v577, %v581
            %v586 = vand.u32 2147483647, %v576
            %vm587 = vcmp.eq.f32.partialorder %v586, 8.507059e+37
            %v588 = vand.u32 %v576, 2147483648
            %v589 = vor.u32 1.1754944e-38, %v588
            %v590 = vsel %vm587, %v589, %v585
            %v591 = vand.u32 2147483647, %v537
            %v592 = vand.u32 2147483647, %v539
            %v593 = vand.u32 2147483647, %v541
            %v594 = vmin.f32 %v591, %v593
            %v595 = vmul.f32 1.1920929e-08, %v594
            %vm596 = vcmp.le.f32.partialorder %v592, %v595
            %v597 = vsel %vm596, 0.0, %v590
            %v598 = vmul.f32 %v597, %v597
            %v599 = vadd.f32 1.0, %v598
            %v600 = vrsqrt.pop %v599
            %v601 = vmul.f32 %v600, %v599
            %v602 = vmul.f32 %v601, %v600
            %v603 = vmul.f32 0.5, %v602
            %v604 = vsub.f32 1.5, %v603
            %v605 = vmul.f32 %v600, %v604
            %vm606 = vweird.f32 %v599
            %vm607 = vweird.f32 %v600
            %vm608 = vmor %vm606, %vm607
            %v609 = vsel %vm608, %v600, %v605
            %v610 = vmul.f32 %v597, %v609
            %v611 = vmul.f32 %v597, %v539
            %v612 = vsub.f32 %v537, %v611
            %v613 = vmul.f32 %v597, %v539
            %v614 = vadd.f32 %v541, %v613
            %s615 = smov [#allocation25]
            %616 = vst [vmem:[%s615] sm:$0xff] %v612
            %s617 = smov [#allocation26]
            %618 = vst [vmem:[%s617] sm:$0xff] %v614
            %s619 = smov %s534
            %620 = vst [vmem:[%s619] sm:$0xff] %v609
            %s621 = smov %s535
            %622 = vst [vmem:[%s621] sm:$0xff] %v610
            %s623 = smov [#allocation27]
            %v624 = vld [vmem:[%s623] ss:$0 sm:$0xff]
            %v625 = vlaneseq
            %v626 = vand.u32 %v625, 127
            %v627 = vmov %v626
            %v628 = vlaneseq
            %v629 = vshrl.u32 %v628, 7
            %v630 = vmov %v629
            %vm632 = vcmp.eq.s32.totalorder %v630, %v627
            %v633 = vsel %vm632, %v624, 0.0
            %634 = vadd.xlane.f32.xlu0 %v633
            %v635 = vpop.xlane.xlu0 %634
            %s636 = smov [#allocation29]
            %637 = vst [vmem:[%s636] sm:$0xff] %v635
            %s638 = smov [#allocation28]
            %v639 = vld [vmem:[%s638] ss:$0 sm:$0xff]
            %v640 = vlaneseq
            %v641 = vand.u32 %v640, 127
            %v642 = vmov %v641
            %v643 = vlaneseq
            %v644 = vshrl.u32 %v643, 7
            %v645 = vmov %v644
            %vm647 = vcmp.eq.s32.totalorder %v645, %v642
            %v648 = vsel %vm647, %v639, 0.0
            %649 = vadd.xlane.f32.xlu0 %v648
            %v650 = vpop.xlane.xlu0 %649
            %s651 = smov [#allocation30]
            %652 = vst [vmem:[%s651] sm:$0xff] %v650
            %s653 = smov [#allocation29]
            %v654 = vld [vmem:[%s653] sm:$0xff]
            %s655 = smov [#allocation30]
            %v656 = vld [vmem:[%s655] sm:$0xff]
            %s657 = smov [#allocation18]
            %s658 = smov [#allocation19]
            %s659 = smov [#allocation20]
            %s660 = smov [#allocation21]
            %v661 = vld [vmem:[%s657] sm:$0xf]
            %v662 = vld [vmem:[%s658] sm:$0xf]
            %v663 = vld [vmem:[%s659] sm:$0xf]
            %v664 = vld [vmem:[%s660] sm:$0xf]
            %v665 = vmul.f32 %v654, %v661
            %v666 = vmul.f32 %v656, %v663
            %v667 = vsub.f32 %v665, %v666
            %v668 = vmul.f32 %v654, %v662
            %v669 = vmul.f32 %v656, %v664
            %v670 = vsub.f32 %v668, %v669
            %v671 = vmul.f32 %v656, %v661
            %v672 = vmul.f32 %v654, %v663
            %v673 = vadd.f32 %v671, %v672
            %v674 = vmul.f32 %v656, %v662
            %v675 = vmul.f32 %v654, %v664
            %v676 = vadd.f32 %v674, %v675
            %677 = vst [vmem:[%s657] sm:$0xf] %v667
            %678 = vst [vmem:[%s658] sm:$0xf] %v670
            %679 = vst [vmem:[%s659] sm:$0xf] %v673
            %680 = vst [vmem:[%s660] sm:$0xf] %v676
            %s681 = smov [#allocation27]
            %v682 = vld [vmem:[%s681] ss:$0 sm:$0xff]
            %s683 = smov [#allocation28]
            %v684 = vld [vmem:[%s683] ss:$0 sm:$0xff]
            %s685 = smov [#allocation18]
            %s686 = smov [#allocation19]
            %s687 = smov [#allocation20]
            %s688 = smov [#allocation21]
            %v689 = vld [vmem:[%s685] sm:$0xf]
            %v690 = vld [vmem:[%s686] sm:$0xf]
            %v691 = vld [vmem:[%s687] sm:$0xf]
            %v692 = vld [vmem:[%s688] sm:$0xf]
            %v693 = vmul.f32 %v682, %v689
            %v694 = vmul.f32 %v684, %v690
            %v695 = vsub.f32 %v693, %v694
            %v696 = vmul.f32 %v684, %v689
            %v697 = vmul.f32 %v682, %v690
            %v698 = vadd.f32 %v696, %v697
            %v699 = vmul.f32 %v682, %v691
            %v700 = vmul.f32 %v684, %v692
            %v701 = vsub.f32 %v699, %v700
            %v702 = vmul.f32 %v684, %v691
            %v703 = vmul.f32 %v682, %v692
            %v704 = vadd.f32 %v702, %v703
            %705 = vst [vmem:[%s685] sm:$0xf] %v695
            %706 = vst [vmem:[%s686] sm:$0xf] %v698
            %707 = vst [vmem:[%s687] sm:$0xf] %v701
            %708 = vst [vmem:[%s688] sm:$0xf] %v704
            %s709 = smov [#allocation18]
            %s710 = smov [#allocation25]
            %v711 = vlaneseq
            %v712 = vand.u32 %v711, 127
            %v713 = vmov %v712
            %v714 = vlaneseq
            %v715 = vshrl.u32 %v714, 7
            %v716 = vmov %v715
            %v717 = vld [vmem:[%s710] ss:$0 sm:$0xff]
            %v718 = vld [vmem:[%s709] sm:$0xf]
            %vm721 = vcmp.eq.s32.totalorder %v716, %v713
            %v722 = vsel %vm721, %v717, %v718
            %723 = vst [vmem:[%s709] sm:$0xf] %v722
            %s724 = smov [#allocation19]
            %v725 = vlaneseq
            %v726 = vand.u32 %v725, 127
            %v727 = vmov %v726
            %v728 = vlaneseq
            %v729 = vshrl.u32 %v728, 7
            %v730 = vmov %v729
            %v731 = vld [vmem:[%s724] sm:$0xf]
            %vm734 = vcmp.eq.s32.totalorder %v730, %v727
            %v735 = vsel %vm734, 0.0, %v731
            %736 = vst [vmem:[%s724] sm:$0xf] %v735
            %s737 = smov [#allocation20]
            %v738 = vlaneseq
            %v739 = vand.u32 %v738, 127
            %v740 = vmov %v739
            %v741 = vlaneseq
            %v742 = vshrl.u32 %v741, 7
            %v743 = vmov %v742
            %v744 = vld [vmem:[%s737] sm:$0xf]
            %vm747 = vcmp.eq.s32.totalorder %v743, %v740
            %v748 = vsel %vm747, 0.0, %v744
            %749 = vst [vmem:[%s737] sm:$0xf] %v748
            %s750 = smov [#allocation21]
            %s751 = smov [#allocation26]
            %v752 = vlaneseq
            %v753 = vand.u32 %v752, 127
            %v754 = vmov %v753
            %v755 = vlaneseq
            %v756 = vshrl.u32 %v755, 7
            %v757 = vmov %v756
            %v758 = vld [vmem:[%s751] ss:$0 sm:$0xff]
            %v759 = vld [vmem:[%s750] sm:$0xf]
            %vm762 = vcmp.eq.s32.totalorder %v757, %v754
            %v763 = vsel %vm762, %v758, %v759
            %764 = vst [vmem:[%s750] sm:$0xf] %v763
            %s765 = smov [#allocation18]
            %s766 = smov [#allocation19]
            %v767 = vld [vmem:[%s766] sm:$0xf]
            %768 = vrot.lane.b32.xlu0 %v767, 1
            %v769 = vpop.permute.xlu0 %768
            %v770 = vld [vmem:[%s765] sm:$0xf]
            %v771 = vld [vmem:[%s765] sm:$0xf]
            %772 = vrot.lane.b32.xlu0 %v771, 1
            %v773 = vpop.permute.xlu0 %772
            %v774 = vlaneseq
            %v775 = vand.u32 %v774, 127
            %vm776 = vcmp.eq.s32.totalorder %v775, 0
            %v777 = vsel %vm776, %v771, %v773
            %v778 = vlaneseq
            %v779 = vand.u32 %v778, 127
            %vm780 = vcmp.eq.s32.totalorder %v779, 1
            %v781 = vsel %vm780, %v769, %v777
            %v782 = vlaneseq
            %v783 = vand.u32 %v782, 127
            %vm784 = vcmp.ge.s32.totalorder %v783, 0
            %vm785 = vcmp.lt.s32.totalorder %v783, 4
            %vm786 = vmand %vm784, %vm785
            %v787 = vsel %vm786, %v781, 0.0
            %v788 = vld [vmem:[%s766] sm:$0xf]
            %789 = vrot.lane.b32.xlu0 %v788, 127
            %v790 = vpop.permute.xlu0 %789
            %v791 = vlaneseq
            %v792 = vand.u32 %v791, 127
            %vm793 = vcmp.eq.s32.totalorder %v792, 3
            %v794 = vsel %vm793, %v770, %v790
            %795 = vst [vmem:[%s765] sm:$0xf] %v787
            %796 = vst [vmem:[%s766] sm:$0xf] %v794
            %s797 = smov [#allocation20]
            %s798 = smov [#allocation21]
            %v799 = vld [vmem:[%s798] sm:$0xf]
            %800 = vrot.lane.b32.xlu0 %v799, 1
            %v801 = vpop.permute.xlu0 %800
            %v802 = vld [vmem:[%s797] sm:$0xf]
            %v803 = vld [vmem:[%s797] sm:$0xf]
            %804 = vrot.lane.b32.xlu0 %v803, 1
            %v805 = vpop.permute.xlu0 %804
            %v806 = vlaneseq
            %v807 = vand.u32 %v806, 127
            %vm808 = vcmp.eq.s32.totalorder %v807, 0
            %v809 = vsel %vm808, %v803, %v805
            %v810 = vlaneseq
            %v811 = vand.u32 %v810, 127
            %vm812 = vcmp.eq.s32.totalorder %v811, 1
            %v813 = vsel %vm812, %v801, %v809
            %v814 = vlaneseq
            %v815 = vand.u32 %v814, 127
            %vm816 = vcmp.ge.s32.totalorder %v815, 0
            %vm817 = vcmp.lt.s32.totalorder %v815, 4
            %vm818 = vmand %vm816, %vm817
            %v819 = vsel %vm818, %v813, 0.0
            %v820 = vld [vmem:[%s798] sm:$0xf]
            %821 = vrot.lane.b32.xlu0 %v820, 127
            %v822 = vpop.permute.xlu0 %821
            %v823 = vlaneseq
            %v824 = vand.u32 %v823, 127
            %vm825 = vcmp.eq.s32.totalorder %v824, 3
            %v826 = vsel %vm825, %v802, %v822
            %827 = vst [vmem:[%s797] sm:$0xf] %v819
            %828 = vst [vmem:[%s798] sm:$0xf] %v826
            %s829 = smov [#allocation18]
            %s830 = smov [#allocation20]
            %v831 = vld [vmem:[%s829] ss:$0 sm:$0xff]
            %s833 = scalar_lea.vmem %s829, 4294967295
            %v834 = vld [vmem:[%s833] sm:$0xe]
            %v835 = vlaneseq
            %v836 = vshrl.u32 %v835, 7
            %vm837 = vcmp.eq.s32.totalorder %v836, 0
            %v838 = vsel %vm837, %v831, %v834
            %s839 = scalar_lea.vmem %s829, 3
            %v840 = vld [vmem:[%s839] ss:$0 sm:$0xff]
            %841 = vst [vmem:[%s829] sm:$0xf] %v838
            %v842 = vld [vmem:[%s830] ss:$0 sm:$0xff]
            %s843 = scalar_lea.vmem %s829, 1
            %844 = vst [vmem:[%s843] sm:$0x1] %v842
            %s845 = scalar_lea.vmem %s830, 1
            %v846 = vld [vmem:[%s845] sm:$0x7]
            %v847 = vlaneseq
            %v848 = vshrl.u32 %v847, 7
            %vm849 = vcmp.eq.s32.totalorder %v848, 3
            %v850 = vsel %vm849, %v840, %v846
            %v851 = vld [vmem:[%s830] ss:$0 sm:$0xff]
            %852 = vst [vmem:[%s830] sm:$0xf] %v850
            %s853 = smov [#allocation19]
            %s854 = smov [#allocation21]
            %v855 = vld [vmem:[%s853] ss:$0 sm:$0xff]
            %s857 = scalar_lea.vmem %s853, 4294967295
            %v858 = vld [vmem:[%s857] sm:$0xe]
            %v859 = vlaneseq
            %v860 = vshrl.u32 %v859, 7
            %vm861 = vcmp.eq.s32.totalorder %v860, 0
            %v862 = vsel %vm861, %v855, %v858
            %s863 = scalar_lea.vmem %s853, 3
            %v864 = vld [vmem:[%s863] ss:$0 sm:$0xff]
            %865 = vst [vmem:[%s853] sm:$0xf] %v862
            %v866 = vld [vmem:[%s854] ss:$0 sm:$0xff]
            %s867 = scalar_lea.vmem %s853, 1
            %868 = vst [vmem:[%s867] sm:$0x1] %v866
            %s869 = scalar_lea.vmem %s854, 1
            %v870 = vld [vmem:[%s869] sm:$0x7]
            %v871 = vlaneseq
            %v872 = vshrl.u32 %v871, 7
            %vm873 = vcmp.eq.s32.totalorder %v872, 3
            %v874 = vsel %vm873, %v864, %v870
            %v875 = vld [vmem:[%s854] ss:$0 sm:$0xff]
            %876 = vst [vmem:[%s854] sm:$0xf] %v874
            %s877 = smov [#allocation29]
            %v878 = vld [vmem:[%s877] sm:$0xff]
            %s879 = smov [#allocation30]
            %v880 = vld [vmem:[%s879] sm:$0xff]
            %s881 = smov [#allocation10]
            %s882 = smov [#allocation12]
            %s883 = smov [#allocation14]
            %s884 = smov [#allocation16]
            %v885 = vld [vmem:[%s881] sm:$0xf]
            %v886 = vld [vmem:[%s882] sm:$0xf]
            %v887 = vld [vmem:[%s883] sm:$0xf]
            %v888 = vld [vmem:[%s884] sm:$0xf]
            %v889 = vmul.f32 %v878, %v885
            %v890 = vmul.f32 %v880, %v887
            %v891 = vsub.f32 %v889, %v890
            %v892 = vmul.f32 %v878, %v886
            %v893 = vmul.f32 %v880, %v888
            %v894 = vsub.f32 %v892, %v893
            %v895 = vmul.f32 %v880, %v885
            %v896 = vmul.f32 %v878, %v887
            %v897 = vadd.f32 %v895, %v896
            %v898 = vmul.f32 %v880, %v886
            %v899 = vmul.f32 %v878, %v888
            %v900 = vadd.f32 %v898, %v899
            %901 = vst [vmem:[%s881] sm:$0xf] %v891
            %902 = vst [vmem:[%s882] sm:$0xf] %v894
            %903 = vst [vmem:[%s883] sm:$0xf] %v897
            %904 = vst [vmem:[%s884] sm:$0xf] %v900
            %s905 = smov [#allocation10]
            %s906 = smov [#allocation14]
            %v907 = vld [vmem:[%s905] ss:$0 sm:$0xff]
            %s909 = scalar_lea.vmem %s905, 4294967295
            %v910 = vld [vmem:[%s909] sm:$0xe]
            %v911 = vlaneseq
            %v912 = vshrl.u32 %v911, 7
            %vm913 = vcmp.eq.s32.totalorder %v912, 0
            %v914 = vsel %vm913, %v907, %v910
            %s915 = scalar_lea.vmem %s905, 3
            %v916 = vld [vmem:[%s915] ss:$0 sm:$0xff]
            %917 = vst [vmem:[%s905] sm:$0xf] %v914
            %v918 = vld [vmem:[%s906] ss:$0 sm:$0xff]
            %s919 = scalar_lea.vmem %s905, 1
            %920 = vst [vmem:[%s919] sm:$0x1] %v918
            %s921 = scalar_lea.vmem %s906, 1
            %v922 = vld [vmem:[%s921] sm:$0x7]
            %v923 = vlaneseq
            %v924 = vshrl.u32 %v923, 7
            %vm925 = vcmp.eq.s32.totalorder %v924, 3
            %v926 = vsel %vm925, %v916, %v922
            %v927 = vld [vmem:[%s906] ss:$0 sm:$0xff]
            %928 = vst [vmem:[%s906] sm:$0xf] %v926
            %s929 = smov [#allocation12]
            %s930 = smov [#allocation16]
            %v931 = vld [vmem:[%s929] ss:$0 sm:$0xff]
            %s933 = scalar_lea.vmem %s929, 4294967295
            %v934 = vld [vmem:[%s933] sm:$0xe]
            %v935 = vlaneseq
            %v936 = vshrl.u32 %v935, 7
            %vm937 = vcmp.eq.s32.totalorder %v936, 0
            %v938 = vsel %vm937, %v931, %v934
            %s939 = scalar_lea.vmem %s929, 3
            %v940 = vld [vmem:[%s939] ss:$0 sm:$0xff]
            %941 = vst [vmem:[%s929] sm:$0xf] %v938
            %v942 = vld [vmem:[%s930] ss:$0 sm:$0xff]
            %s943 = scalar_lea.vmem %s929, 1
            %944 = vst [vmem:[%s943] sm:$0x1] %v942
            %s945 = scalar_lea.vmem %s930, 1
            %v946 = vld [vmem:[%s945] sm:$0x7]
            %v947 = vlaneseq
            %v948 = vshrl.u32 %v947, 7
            %vm949 = vcmp.eq.s32.totalorder %v948, 3
            %v950 = vsel %vm949, %v940, %v946
            %v951 = vld [vmem:[%s930] ss:$0 sm:$0xff]
            %952 = vst [vmem:[%s930] sm:$0xf] %v950
          $region152: #{custom-call.2} parent=144 // loop_footer
            %s473 = sadd.s32 1, %s469
          $region153: #{custom-call.2} parent=144 // loop_footer_branch
            %468 = sbr.rel target = $region149
          $region154: #{custom-call.2} parent=144 // loop_exit
            _
          %s953 = sadd.s32 %s371, 1
        $region145: #{custom-call.2} parent=139 // loop_footer
          _
        $region146: #{custom-call.2} parent=139 // loop_footer_branch
          %370 = sbr.rel target = $region142
        $region147: #{custom-call.2} parent=139 // loop_exit
          _
        %s956 = sand.u32 %s17, 7
        %s957 = scalar_lea.vmem %s287, %s956 [#allocation8]
        %s958 = sand.u32 %s17, 7
        %s959 = scalar_lea.vmem %s293, %s958 [#allocation9]
        %s960 = smov [#allocation18]
        %s961 = smov %s957
        %v962 = vlaneseq
        %v963 = vand.u32 %v962, 127
        %v964 = vmov %v963
        %v965 = vlaneseq
        %v966 = vshrl.u32 %v965, 7
        %v967 = vmov %v966
        %v968 = vld [vmem:[%s960] sm:$0xf]
        %vm971 = vcmp.eq.s32.totalorder %v967, %v964
        %v972 = vsel %vm971, %v968, 0.0
        %v973 = vrot.slane %v972, 4
        %v974 = vadd.f32 %v972, %v973
        %v975 = vrot.slane %v974, 2
        %v976 = vadd.f32 %v974, %v975
        %v977 = vrot.slane %v976, 1
        %v978 = vadd.f32 %v976, %v977
        %979 = vst [vmem:[%s961] sm:$0x1] %v978
        %s980 = smov [#allocation21]
        %s981 = smov %s959
        %v982 = vlaneseq
        %v983 = vand.u32 %v982, 127
        %v984 = vmov %v983
        %v985 = vlaneseq
        %v986 = vshrl.u32 %v985, 7
        %v987 = vmov %v986
        %v988 = vld [vmem:[%s980] sm:$0xf]
        %vm991 = vcmp.eq.s32.totalorder %v987, %v984
        %v992 = vsel %vm991, %v988, 0.0
        %v993 = vrot.slane %v992, 4
        %v994 = vadd.f32 %v992, %v993
        %v995 = vrot.slane %v994, 2
        %v996 = vadd.f32 %v994, %v995
        %v997 = vrot.slane %v996, 1
        %v998 = vadd.f32 %v996, %v997
        %999 = vst [vmem:[%s981] sm:$0x1] %v998
        %s1001 = ssub.s32 16, 1
        %v1002 = vld [vmem:[#allocation10] sm:%s1001]
        %s1004 = ssub.s32 16, 1
        %1005 = vst [vmem:[%s297] sm:%s1004] %v1002
        %s1007 = ssub.s32 16, 1
        %v1008 = vld [vmem:[#allocation12] sm:%s1007]
        %s1010 = ssub.s32 16, 1
        %1011 = vst [vmem:[%s301] sm:%s1010] %v1008
        %s1013 = ssub.s32 16, 1
        %v1014 = vld [vmem:[#allocation14] sm:%s1013]
        %s1016 = ssub.s32 16, 1
        %1017 = vst [vmem:[%s305] sm:%s1016] %v1014
        %s1019 = ssub.s32 16, 1
        %v1020 = vld [vmem:[#allocation16] sm:%s1019]
        %s1022 = ssub.s32 16, 1
        %1023 = vst [vmem:[%s309] sm:%s1022] %v1020
        %s1024 = sand.u32 %s27, 1
        %s1025 = sand.u32 %s27, 1
        %s1026 = smul.addr %s1025, 8
        %s1027 = scalar_lea.vmem [#allocation8], %s1026
        %s1028 = sand.u32 %s55, 1
        %s1029 = sand.u32 %s55, 1
        %s1030 = smul.addr %s1029, 8
        %s1031 = scalar_lea.vmem [#allocation9], %s1030
        %s1032 = sand.u32 %s17, 1
        %s1033 = sand.u32 %s17, 1
        %s1034 = smul.addr %s1033, 4
        %s1035 = scalar_lea.vmem [#allocation11], %s1034
        %s1036 = sand.u32 %s17, 1
        %s1037 = sand.u32 %s17, 1
        %s1038 = smul.addr %s1037, 4
        %s1039 = scalar_lea.vmem [#allocation13], %s1038
        %s1040 = sand.u32 %s17, 1
        %s1041 = sand.u32 %s17, 1
        %s1042 = smul.addr %s1041, 4
        %s1043 = scalar_lea.vmem [#allocation15], %s1042
        %s1044 = sand.u32 %s17, 1
        %s1045 = sand.u32 %s17, 1
        %s1046 = smul.addr %s1045, 4
        %s1047 = scalar_lea.vmem [#allocation17], %s1046
        // Predicated region
        $region155: #{custom-call.2} parent=139 // pred_check
          %p1048 = pneg %p37
        $region156: #{custom-call.2} parent=139 // pred_check_branch
          %1050 = sbr.rel (%p1048) target = $region158
        $region157: #{custom-call.2} parent=139 // pred_region
          %s1051 = sshrl.u32 %s17, 3
          %s1052 = smul.addr %s1051, 8
          %s1053 = scalar_lea.vmem %s4, %s1052
          // Predicated region
          $region159: #{custom-call.2} parent=157 // pred_check
            _
          $region160: #{custom-call.2} parent=157 // pred_check_branch
            %1055 = sbr.rel (0) target = $region162
          $region161: #{custom-call.2} parent=157 // pred_region
            // Predicated region
            $region163: #{custom-call.2} parent=161 // pred_check
              _
            $region164: #{custom-call.2} parent=161 // pred_check_branch
              %1057 = sbr.rel (0) target = $region166
            $region165: #{custom-call.2} parent=161 // pred_region
              // Predicated region
              $region178: #{custom-call.2} parent=165 // pred_check
                _
              $region179: #{custom-call.2} parent=165 // pred_check_branch
                %1073 = sbr.rel (0) target = $region181
              $region180: #{custom-call.2} parent=165 // pred_region
                loop: start=0, step=1, limit=1
                $region182: #{custom-call.2} parent=180 // loop_pre_header
                  _
                $region183: #{custom-call.2} parent=180 // loop_header
                  %s1075 = sphi 0, %s1079
                  %p1076 = scmp.ge.s32.totalorder %s1075, 1
                  %s1080 = sphi %s1027, %s1027
                  %s1081 = sphi %s1053, %s1053
                $region184: #{custom-call.2} parent=180 // loop_header_branch
                  %1078 = sbr.rel (%p1076) target = $region188
                $region185: #{custom-call.2} parent=180 // loop_body
                  %v1082 = vld [vmem:[%s1080] sm:$0xff]
                  %1083 = vst [vmem:[%s1081] sm:$0xff] %v1082
                $region186: #{custom-call.2} parent=180 // loop_footer
                  %s1079 = sadd.s32 1, %s1075
                $region187: #{custom-call.2} parent=180 // loop_footer_branch
                  %1074 = sbr.rel target = $region183
                $region188: #{custom-call.2} parent=180 // loop_exit
                  _
              $region181: #{custom-call.2} parent=165 // pred_fallthru
                _
              // Predicated region
              $region189: #{custom-call.2} parent=165 // pred_check
                _
              $region190: #{custom-call.2} parent=165 // pred_check_branch
                %1085 = sbr.rel target = $region192
              $region191: #{custom-call.2} parent=165 // pred_region
                _
              $region192: #{custom-call.2} parent=165 // pred_fallthru
                _
            $region166: #{custom-call.2} parent=161 // pred_fallthru
              _
            // Predicated region
            $region167: #{custom-call.2} parent=161 // pred_check
              _
            $region168: #{custom-call.2} parent=161 // pred_check_branch
              %1059 = sbr.rel target = $region170
            $region169: #{custom-call.2} parent=161 // pred_region
              %s1061 = ssub.s32 256, 1
              loop: start=0, step=1, limit=1
              $region171: #{custom-call.2} parent=169 // loop_pre_header
                _
              $region172: #{custom-call.2} parent=169 // loop_header
                %s1063 = sphi 0, %s1067
                %p1064 = scmp.ge.s32.totalorder %s1063, 1
                %s1068 = sphi %s1027, %s1027
                %s1069 = sphi %s1053, %s1053
              $region173: #{custom-call.2} parent=169 // loop_header_branch
                %1066 = sbr.rel (%p1064) target = $region177
              $region174: #{custom-call.2} parent=169 // loop_body
                %v1070 = vld [vmem:[%s1068] sm:%s1061]
                %1071 = vst [vmem:[%s1069] sm:%s1061] %v1070
              $region175: #{custom-call.2} parent=169 // loop_footer
                %s1067 = sadd.s32 1, %s1063
              $region176: #{custom-call.2} parent=169 // loop_footer_branch
                %1062 = sbr.rel target = $region172
              $region177: #{custom-call.2} parent=169 // loop_exit
                _
            $region170: #{custom-call.2} parent=161 // pred_fallthru
              _
          $region162: #{custom-call.2} parent=157 // pred_fallthru
            _
          %1086 = vnop
        $region158: #{custom-call.2} parent=139 // pred_fallthru
          _
        // Predicated region
        $region193: #{custom-call.2} parent=139 // pred_check
          %p1087 = pneg %p65
        $region194: #{custom-call.2} parent=139 // pred_check_branch
          %1089 = sbr.rel (%p1087) target = $region196
        $region195: #{custom-call.2} parent=139 // pred_region
          %s1090 = sshrl.u32 %s17, 3
          %s1091 = smul.addr %s1090, 8
          %s1092 = scalar_lea.vmem %s5, %s1091
          // Predicated region
          $region197: #{custom-call.2} parent=195 // pred_check
            _
          $region198: #{custom-call.2} parent=195 // pred_check_branch
            %1094 = sbr.rel (0) target = $region200
          $region199: #{custom-call.2} parent=195 // pred_region
            // Predicated region
            $region201: #{custom-call.2} parent=199 // pred_check
              _
            $region202: #{custom-call.2} parent=199 // pred_check_branch
              %1096 = sbr.rel (0) target = $region204
            $region203: #{custom-call.2} parent=199 // pred_region
              // Predicated region
              $region216: #{custom-call.2} parent=203 // pred_check
                _
              $region217: #{custom-call.2} parent=203 // pred_check_branch
                %1112 = sbr.rel (0) target = $region219
              $region218: #{custom-call.2} parent=203 // pred_region
                loop: start=0, step=1, limit=1
                $region220: #{custom-call.2} parent=218 // loop_pre_header
                  _
                $region221: #{custom-call.2} parent=218 // loop_header
                  %s1114 = sphi 0, %s1118
                  %p1115 = scmp.ge.s32.totalorder %s1114, 1
                  %s1119 = sphi %s1031, %s1031
                  %s1120 = sphi %s1092, %s1092
                $region222: #{custom-call.2} parent=218 // loop_header_branch
                  %1117 = sbr.rel (%p1115) target = $region226
                $region223: #{custom-call.2} parent=218 // loop_body
                  %v1121 = vld [vmem:[%s1119] sm:$0xff]
                  %1122 = vst [vmem:[%s1120] sm:$0xff] %v1121
                $region224: #{custom-call.2} parent=218 // loop_footer
                  %s1118 = sadd.s32 1, %s1114
                $region225: #{custom-call.2} parent=218 // loop_footer_branch
                  %1113 = sbr.rel target = $region221
                $region226: #{custom-call.2} parent=218 // loop_exit
                  _
              $region219: #{custom-call.2} parent=203 // pred_fallthru
                _
              // Predicated region
              $region227: #{custom-call.2} parent=203 // pred_check
                _
              $region228: #{custom-call.2} parent=203 // pred_check_branch
                %1124 = sbr.rel target = $region230
              $region229: #{custom-call.2} parent=203 // pred_region
                _
              $region230: #{custom-call.2} parent=203 // pred_fallthru
                _
            $region204: #{custom-call.2} parent=199 // pred_fallthru
              _
            // Predicated region
            $region205: #{custom-call.2} parent=199 // pred_check
              _
            $region206: #{custom-call.2} parent=199 // pred_check_branch
              %1098 = sbr.rel target = $region208
            $region207: #{custom-call.2} parent=199 // pred_region
              %s1100 = ssub.s32 256, 1
              loop: start=0, step=1, limit=1
              $region209: #{custom-call.2} parent=207 // loop_pre_header
                _
              $region210: #{custom-call.2} parent=207 // loop_header
                %s1102 = sphi 0, %s1106
                %p1103 = scmp.ge.s32.totalorder %s1102, 1
                %s1107 = sphi %s1031, %s1031
                %s1108 = sphi %s1092, %s1092
              $region211: #{custom-call.2} parent=207 // loop_header_branch
                %1105 = sbr.rel (%p1103) target = $region215
              $region212: #{custom-call.2} parent=207 // loop_body
                %v1109 = vld [vmem:[%s1107] sm:%s1100]
                %1110 = vst [vmem:[%s1108] sm:%s1100] %v1109
              $region213: #{custom-call.2} parent=207 // loop_footer
                %s1106 = sadd.s32 1, %s1102
              $region214: #{custom-call.2} parent=207 // loop_footer_branch
                %1101 = sbr.rel target = $region210
              $region215: #{custom-call.2} parent=207 // loop_exit
                _
            $region208: #{custom-call.2} parent=199 // pred_fallthru
              _
          $region200: #{custom-call.2} parent=195 // pred_fallthru
            _
          %1125 = vnop
        $region196: #{custom-call.2} parent=139 // pred_fallthru
          _
        %s1126 = smul.addr %s17, 4
        %s1127 = scalar_lea.vmem %s6, %s1126
        // Predicated region
        $region231: #{custom-call.2} parent=139 // pred_check
          _
        $region232: #{custom-call.2} parent=139 // pred_check_branch
          %1129 = sbr.rel (0) target = $region234
        $region233: #{custom-call.2} parent=139 // pred_region
          // Predicated region
          $region235: #{custom-call.2} parent=233 // pred_check
            _
          $region236: #{custom-call.2} parent=233 // pred_check_branch
            %1131 = sbr.rel target = $region238
          $region237: #{custom-call.2} parent=233 // pred_region
            // Predicated region
            $region250: #{custom-call.2} parent=237 // pred_check
              _
            $region251: #{custom-call.2} parent=237 // pred_check_branch
              %1147 = sbr.rel (0) target = $region253
            $region252: #{custom-call.2} parent=237 // pred_region
              %s1149 = ssub.s32 16, 1
              loop: start=0, step=1, limit=1
              $region254: #{custom-call.2} parent=252 // loop_pre_header
                _
              $region255: #{custom-call.2} parent=252 // loop_header
                %s1151 = sphi 0, %s1155
                %p1152 = scmp.ge.s32.totalorder %s1151, 1
                %s1156 = sphi %s1035, %s1035
                %s1157 = sphi %s1127, %s1127
              $region256: #{custom-call.2} parent=252 // loop_header_branch
                %1154 = sbr.rel (%p1152) target = $region260
              $region257: #{custom-call.2} parent=252 // loop_body
                %v1158 = vld [vmem:[%s1156] sm:%s1149]
                %1159 = vst [vmem:[%s1157] sm:%s1149] %v1158
              $region258: #{custom-call.2} parent=252 // loop_footer
                %s1155 = sadd.s32 1, %s1151
              $region259: #{custom-call.2} parent=252 // loop_footer_branch
                %1150 = sbr.rel target = $region255
              $region260: #{custom-call.2} parent=252 // loop_exit
                _
            $region253: #{custom-call.2} parent=237 // pred_fallthru
              _
          $region238: #{custom-call.2} parent=233 // pred_fallthru
            _
          // Predicated region
          $region239: #{custom-call.2} parent=233 // pred_check
            _
          $region240: #{custom-call.2} parent=233 // pred_check_branch
            %1133 = sbr.rel (0) target = $region242
          $region241: #{custom-call.2} parent=233 // pred_region
            %s1135 = ssub.s32 16, 1
            loop: start=0, step=1, limit=1
            $region243: #{custom-call.2} parent=241 // loop_pre_header
              _
            $region244: #{custom-call.2} parent=241 // loop_header
              %s1137 = sphi 0, %s1141
              %p1138 = scmp.ge.s32.totalorder %s1137, 1
              %s1142 = sphi %s1035, %s1035
              %s1143 = sphi %s1127, %s1127
            $region245: #{custom-call.2} parent=241 // loop_header_branch
              %1140 = sbr.rel (%p1138) target = $region249
            $region246: #{custom-call.2} parent=241 // loop_body
              %v1144 = vld [vmem:[%s1142] sm:%s1135]
              %1145 = vst [vmem:[%s1143] sm:%s1135] %v1144
            $region247: #{custom-call.2} parent=241 // loop_footer
              %s1141 = sadd.s32 1, %s1137
            $region248: #{custom-call.2} parent=241 // loop_footer_branch
              %1136 = sbr.rel target = $region244
            $region249: #{custom-call.2} parent=241 // loop_exit
              _
          $region242: #{custom-call.2} parent=233 // pred_fallthru
            _
        $region234: #{custom-call.2} parent=139 // pred_fallthru
          _
        %1160 = vnop
        %s1161 = smul.addr %s17, 4
        %s1162 = scalar_lea.vmem %s7, %s1161
        // Predicated region
        $region261: #{custom-call.2} parent=139 // pred_check
          _
        $region262: #{custom-call.2} parent=139 // pred_check_branch
          %1164 = sbr.rel (0) target = $region264
        $region263: #{custom-call.2} parent=139 // pred_region
          // Predicated region
          $region265: #{custom-call.2} parent=263 // pred_check
            _
          $region266: #{custom-call.2} parent=263 // pred_check_branch
            %1166 = sbr.rel target = $region268
          $region267: #{custom-call.2} parent=263 // pred_region
            // Predicated region
            $region280: #{custom-call.2} parent=267 // pred_check
              _
            $region281: #{custom-call.2} parent=267 // pred_check_branch
              %1182 = sbr.rel (0) target = $region283
            $region282: #{custom-call.2} parent=267 // pred_region
              %s1184 = ssub.s32 16, 1
              loop: start=0, step=1, limit=1
              $region284: #{custom-call.2} parent=282 // loop_pre_header
                _
              $region285: #{custom-call.2} parent=282 // loop_header
                %s1186 = sphi 0, %s1190
                %p1187 = scmp.ge.s32.totalorder %s1186, 1
                %s1191 = sphi %s1039, %s1039
                %s1192 = sphi %s1162, %s1162
              $region286: #{custom-call.2} parent=282 // loop_header_branch
                %1189 = sbr.rel (%p1187) target = $region290
              $region287: #{custom-call.2} parent=282 // loop_body
                %v1193 = vld [vmem:[%s1191] sm:%s1184]
                %1194 = vst [vmem:[%s1192] sm:%s1184] %v1193
              $region288: #{custom-call.2} parent=282 // loop_footer
                %s1190 = sadd.s32 1, %s1186
              $region289: #{custom-call.2} parent=282 // loop_footer_branch
                %1185 = sbr.rel target = $region285
              $region290: #{custom-call.2} parent=282 // loop_exit
                _
            $region283: #{custom-call.2} parent=267 // pred_fallthru
              _
          $region268: #{custom-call.2} parent=263 // pred_fallthru
            _
          // Predicated region
          $region269: #{custom-call.2} parent=263 // pred_check
            _
          $region270: #{custom-call.2} parent=263 // pred_check_branch
            %1168 = sbr.rel (0) target = $region272
          $region271: #{custom-call.2} parent=263 // pred_region
            %s1170 = ssub.s32 16, 1
            loop: start=0, step=1, limit=1
            $region273: #{custom-call.2} parent=271 // loop_pre_header
              _
            $region274: #{custom-call.2} parent=271 // loop_header
              %s1172 = sphi 0, %s1176
              %p1173 = scmp.ge.s32.totalorder %s1172, 1
              %s1177 = sphi %s1039, %s1039
              %s1178 = sphi %s1162, %s1162
            $region275: #{custom-call.2} parent=271 // loop_header_branch
              %1175 = sbr.rel (%p1173) target = $region279
            $region276: #{custom-call.2} parent=271 // loop_body
              %v1179 = vld [vmem:[%s1177] sm:%s1170]
              %1180 = vst [vmem:[%s1178] sm:%s1170] %v1179
            $region277: #{custom-call.2} parent=271 // loop_footer
              %s1176 = sadd.s32 1, %s1172
            $region278: #{custom-call.2} parent=271 // loop_footer_branch
              %1171 = sbr.rel target = $region274
            $region279: #{custom-call.2} parent=271 // loop_exit
              _
          $region272: #{custom-call.2} parent=263 // pred_fallthru
            _
        $region264: #{custom-call.2} parent=139 // pred_fallthru
          _
        %1195 = vnop
        %s1196 = smul.addr %s17, 4
        %s1197 = scalar_lea.vmem %s8, %s1196
        // Predicated region
        $region291: #{custom-call.2} parent=139 // pred_check
          _
        $region292: #{custom-call.2} parent=139 // pred_check_branch
          %1199 = sbr.rel (0) target = $region294
        $region293: #{custom-call.2} parent=139 // pred_region
          // Predicated region
          $region295: #{custom-call.2} parent=293 // pred_check
            _
          $region296: #{custom-call.2} parent=293 // pred_check_branch
            %1201 = sbr.rel target = $region298
          $region297: #{custom-call.2} parent=293 // pred_region
            // Predicated region
            $region310: #{custom-call.2} parent=297 // pred_check
              _
            $region311: #{custom-call.2} parent=297 // pred_check_branch
              %1217 = sbr.rel (0) target = $region313
            $region312: #{custom-call.2} parent=297 // pred_region
              %s1219 = ssub.s32 16, 1
              loop: start=0, step=1, limit=1
              $region314: #{custom-call.2} parent=312 // loop_pre_header
                _
              $region315: #{custom-call.2} parent=312 // loop_header
                %s1221 = sphi 0, %s1225
                %p1222 = scmp.ge.s32.totalorder %s1221, 1
                %s1226 = sphi %s1043, %s1043
                %s1227 = sphi %s1197, %s1197
              $region316: #{custom-call.2} parent=312 // loop_header_branch
                %1224 = sbr.rel (%p1222) target = $region320
              $region317: #{custom-call.2} parent=312 // loop_body
                %v1228 = vld [vmem:[%s1226] sm:%s1219]
                %1229 = vst [vmem:[%s1227] sm:%s1219] %v1228
              $region318: #{custom-call.2} parent=312 // loop_footer
                %s1225 = sadd.s32 1, %s1221
              $region319: #{custom-call.2} parent=312 // loop_footer_branch
                %1220 = sbr.rel target = $region315
              $region320: #{custom-call.2} parent=312 // loop_exit
                _
            $region313: #{custom-call.2} parent=297 // pred_fallthru
              _
          $region298: #{custom-call.2} parent=293 // pred_fallthru
            _
          // Predicated region
          $region299: #{custom-call.2} parent=293 // pred_check
            _
          $region300: #{custom-call.2} parent=293 // pred_check_branch
            %1203 = sbr.rel (0) target = $region302
          $region301: #{custom-call.2} parent=293 // pred_region
            %s1205 = ssub.s32 16, 1
            loop: start=0, step=1, limit=1
            $region303: #{custom-call.2} parent=301 // loop_pre_header
              _
            $region304: #{custom-call.2} parent=301 // loop_header
              %s1207 = sphi 0, %s1211
              %p1208 = scmp.ge.s32.totalorder %s1207, 1
              %s1212 = sphi %s1043, %s1043
              %s1213 = sphi %s1197, %s1197
            $region305: #{custom-call.2} parent=301 // loop_header_branch
              %1210 = sbr.rel (%p1208) target = $region309
            $region306: #{custom-call.2} parent=301 // loop_body
              %v1214 = vld [vmem:[%s1212] sm:%s1205]
              %1215 = vst [vmem:[%s1213] sm:%s1205] %v1214
            $region307: #{custom-call.2} parent=301 // loop_footer
              %s1211 = sadd.s32 1, %s1207
            $region308: #{custom-call.2} parent=301 // loop_footer_branch
              %1206 = sbr.rel target = $region304
            $region309: #{custom-call.2} parent=301 // loop_exit
              _
          $region302: #{custom-call.2} parent=293 // pred_fallthru
            _
        $region294: #{custom-call.2} parent=139 // pred_fallthru
          _
        %1230 = vnop
        %s1231 = smul.addr %s17, 4
        %s1232 = scalar_lea.vmem %s9, %s1231
        // Predicated region
        $region321: #{custom-call.2} parent=139 // pred_check
          _
        $region322: #{custom-call.2} parent=139 // pred_check_branch
          %1234 = sbr.rel (0) target = $region324
        $region323: #{custom-call.2} parent=139 // pred_region
          // Predicated region
          $region325: #{custom-call.2} parent=323 // pred_check
            _
          $region326: #{custom-call.2} parent=323 // pred_check_branch
            %1236 = sbr.rel target = $region328
          $region327: #{custom-call.2} parent=323 // pred_region
            // Predicated region
            $region340: #{custom-call.2} parent=327 // pred_check
              _
            $region341: #{custom-call.2} parent=327 // pred_check_branch
              %1252 = sbr.rel (0) target = $region343
            $region342: #{custom-call.2} parent=327 // pred_region
              %s1254 = ssub.s32 16, 1
              loop: start=0, step=1, limit=1
              $region344: #{custom-call.2} parent=342 // loop_pre_header
                _
              $region345: #{custom-call.2} parent=342 // loop_header
                %s1256 = sphi 0, %s1260
                %p1257 = scmp.ge.s32.totalorder %s1256, 1
                %s1261 = sphi %s1047, %s1047
                %s1262 = sphi %s1232, %s1232
              $region346: #{custom-call.2} parent=342 // loop_header_branch
                %1259 = sbr.rel (%p1257) target = $region350
              $region347: #{custom-call.2} parent=342 // loop_body
                %v1263 = vld [vmem:[%s1261] sm:%s1254]
                %1264 = vst [vmem:[%s1262] sm:%s1254] %v1263
              $region348: #{custom-call.2} parent=342 // loop_footer
                %s1260 = sadd.s32 1, %s1256
              $region349: #{custom-call.2} parent=342 // loop_footer_branch
                %1255 = sbr.rel target = $region345
              $region350: #{custom-call.2} parent=342 // loop_exit
                _
            $region343: #{custom-call.2} parent=327 // pred_fallthru
              _
          $region328: #{custom-call.2} parent=323 // pred_fallthru
            _
          // Predicated region
          $region329: #{custom-call.2} parent=323 // pred_check
            _
          $region330: #{custom-call.2} parent=323 // pred_check_branch
            %1238 = sbr.rel (0) target = $region332
          $region331: #{custom-call.2} parent=323 // pred_region
            %s1240 = ssub.s32 16, 1
            loop: start=0, step=1, limit=1
            $region333: #{custom-call.2} parent=331 // loop_pre_header
              _
            $region334: #{custom-call.2} parent=331 // loop_header
              %s1242 = sphi 0, %s1246
              %p1243 = scmp.ge.s32.totalorder %s1242, 1
              %s1247 = sphi %s1047, %s1047
              %s1248 = sphi %s1232, %s1232
            $region335: #{custom-call.2} parent=331 // loop_header_branch
              %1245 = sbr.rel (%p1243) target = $region339
            $region336: #{custom-call.2} parent=331 // loop_body
              %v1249 = vld [vmem:[%s1247] sm:%s1240]
              %1250 = vst [vmem:[%s1248] sm:%s1240] %v1249
            $region337: #{custom-call.2} parent=331 // loop_footer
              %s1246 = sadd.s32 1, %s1242
            $region338: #{custom-call.2} parent=331 // loop_footer_branch
              %1241 = sbr.rel target = $region334
            $region339: #{custom-call.2} parent=331 // loop_exit
              _
          $region332: #{custom-call.2} parent=323 // pred_fallthru
            _
        $region324: #{custom-call.2} parent=139 // pred_fallthru
          _
        %1265 = vnop
      $region140: #{custom-call.2} parent=5 // pred_fallthru
        _
      %p1266 = scmp.le.s32.totalorder 2, %s12
      // Predicated region
      $region351: #{custom-call.2} parent=5 // pred_check
        %p1267 = pneg %p1266
      $region352: #{custom-call.2} parent=5 // pred_check_branch
        %1269 = sbr.rel (%p1267) target = $region354
      $region353: #{custom-call.2} parent=5 // pred_region
        %s1270 = ssub.s32 %s12, 2
        // Predicated region
        $region355: #{custom-call.2} parent=353 // pred_check
          %p1271 = pneg %p43
        $region356: #{custom-call.2} parent=353 // pred_check_branch
          %1273 = sbr.rel (%p1271) target = $region358
        $region357: #{custom-call.2} parent=353 // pred_region
          %s1274 = sand.u32 %s28, 1
          %s1275 = sand.u32 %s28, 1
          %s1276 = smul.addr %s1275, 8
          %s1277 = scalar_lea.vmem [#allocation8], %s1276
        $region358: #{custom-call.2} parent=353 // pred_fallthru
          _
        // Predicated region
        $region359: #{custom-call.2} parent=353 // pred_check
          %p1278 = pneg %p71
        $region360: #{custom-call.2} parent=353 // pred_check_branch
          %1280 = sbr.rel (%p1278) target = $region362
        $region361: #{custom-call.2} parent=353 // pred_region
          %s1281 = sand.u32 %s56, 1
          %s1282 = sand.u32 %s56, 1
          %s1283 = smul.addr %s1282, 8
          %s1284 = scalar_lea.vmem [#allocation9], %s1283
        $region362: #{custom-call.2} parent=353 // pred_fallthru
          _
        %s1285 = sand.u32 %s18, 1
        %s1286 = sand.u32 %s18, 1
        %s1287 = smul.addr %s1286, 4
        %s1288 = scalar_lea.vmem [#allocation11], %s1287
        %s1289 = sand.u32 %s18, 1
        %s1290 = sand.u32 %s18, 1
        %s1291 = smul.addr %s1290, 4
        %s1292 = scalar_lea.vmem [#allocation13], %s1291
        %s1293 = sand.u32 %s18, 1
        %s1294 = sand.u32 %s18, 1
        %s1295 = smul.addr %s1294, 4
        %s1296 = scalar_lea.vmem [#allocation15], %s1295
        %s1297 = sand.u32 %s18, 1
        %s1298 = sand.u32 %s18, 1
        %s1299 = smul.addr %s1298, 4
        %s1300 = scalar_lea.vmem [#allocation17], %s1299
      $region354: #{custom-call.2} parent=5 // pred_fallthru
        _
    $region6: #{custom-call.2} parent=1 // loop_footer
      %s16 = sadd.s32 1, %s12
    $region7: #{custom-call.2} parent=1 // loop_footer_branch
      %11 = sbr.rel target = $region3
    $region8: #{custom-call.2} parent=1 // loop_exit
      _

// kernel: spd_untangent_space.1
$region0: #{spd_untangent_space.1}
  #allocation0 [shape = 'u32[]', space=smem, size = 0x4, offset = 0x4, fixed_abs, tag = 'smem constant byte address 0x4 - core index']
  #allocation1 [shape = 'u32[72,128]{1,0:T(1,128)}', space=vmem, size = 0x9000, scoped, tag = 'internal scratch']
  %s0 = inlined_call_operand.vmem [shape: f32[8,8,256], index: 0, kind: input, shape index: {}]
  %s1 = inlined_call_operand.vmem [shape: f32[8,256], index: 1, kind: input, shape index: {}]
  %s2 = inlined_call_operand.hbm [shape: f32[8,8,256], index: 2, kind: output, shape index: {}]
  %s3 = sld [smem:[#allocation0]]
  $region79: #{spd_untangent_space.1} parent=0
    _
  %s5 = ssub.s32 1, %s3
  %s6 = scalar_select 0, %s5, %s3
  $region1: #{spd_untangent_space.1} parent=0
    #allocation2 [shape = 'u8[65536]{0}', space=vmem, size = 0x10000, scoped, tag = 'input window, operand 0']
    #allocation3 [shape = 'u8[65536]{0}', space=vmem, size = 0x10000, scoped, tag = 'output window, operand 0']
    #allocation4 [shape = 's32[2]{0}', space=sflag, size = 0x8, scoped, tag = 'scoped memory for spd_untangent_space.1']
    %7 = vsyncpa [#allocation4], 0
    %s8 = scalar_lea.sflag [#allocation4], 1
    %9 = vsyncpa %s8, 0
    loop: start=0, step=1, limit=4
    $region2: #{spd_untangent_space.1} parent=1 // loop_pre_header
      _
    $region3: #{spd_untangent_space.1} parent=1 // loop_header
      %s11 = sphi 0, %s15
      %p12 = scmp.ge.s32.totalorder %s11, 4
      %s21 = sphi 0, %s23
      %s24 = sphi 0, %s21
      %s25 = sphi 0, %s24
      %s41 = sphi 0, %s25
      %s47 = sphi 0, %s49
      %s50 = sphi 0, %s47
      %s51 = sphi 0, %s50
      %s67 = sphi 0, %s51
      %s73 = sphi 0, %s75
      %s76 = sphi 0, %s73
      %s77 = sphi 0, %s76
      %s93 = sphi 0, %s77
    $region4: #{spd_untangent_space.1} parent=1 // loop_header_branch
      %14 = sbr.rel (%p12) target = $region8
    $region5: #{spd_untangent_space.1} parent=1 // loop_body
      %s16 = ssub.s32 %s11, 1
      %s17 = ssub.s32 %s11, 2
      %s18 = sadd.s32 %s11, 1
      %s19 = ssub.s32 %s11, %s18
      %p20 = scmp.eq.s32.totalorder %s19, 0
      %s22 = sadd.s32 %s21, 1
      %s23 = scalar_select %p20, %s21, %s22
      %p26 = pneg %p20
      %p27 = scmp.eq.s32.totalorder %s11, 1
      %p28 = por %p26, %p27
      %p29 = scmp.ne.s32.totalorder %s21, %s24
      %p30 = scmp.eq.s32.totalorder %s11, 0
      %p31 = por %p29, %p30
      %p32 = scmp.ne.s32.totalorder %s21, %s24
      %p33 = scmp.eq.s32.totalorder %s16, 1
      %p34 = por %p32, %p33
      %p35 = scmp.ne.s32.totalorder %s24, %s25
      %p36 = scmp.eq.s32.totalorder %s16, 0
      %p37 = por %p35, %p36
      %p38 = scmp.ne.s32.totalorder %s24, %s25
      %p39 = scmp.eq.s32.totalorder %s17, 1
      %p40 = por %p38, %p39
      %p42 = scmp.ne.s32.totalorder %s25, %s41
      %p43 = scmp.eq.s32.totalorder %s17, 0
      %p44 = por %p42, %p43
      %s45 = ssub.s32 %s11, %s18
      %p46 = scmp.eq.s32.totalorder %s45, 0
      %s48 = sadd.s32 %s47, 1
      %s49 = scalar_select %p46, %s47, %s48
      %p52 = pneg %p46
      %p53 = scmp.eq.s32.totalorder %s11, 1
      %p54 = por %p52, %p53
      %p55 = scmp.ne.s32.totalorder %s47, %s50
      %p56 = scmp.eq.s32.totalorder %s11, 0
      %p57 = por %p55, %p56
      %p58 = scmp.ne.s32.totalorder %s47, %s50
      %p59 = scmp.eq.s32.totalorder %s16, 1
      %p60 = por %p58, %p59
      %p61 = scmp.ne.s32.totalorder %s50, %s51
      %p62 = scmp.eq.s32.totalorder %s16, 0
      %p63 = por %p61, %p62
      %p64 = scmp.ne.s32.totalorder %s50, %s51
      %p65 = scmp.eq.s32.totalorder %s17, 1
      %p66 = por %p64, %p65
      %p68 = scmp.ne.s32.totalorder %s51, %s67
      %p69 = scmp.eq.s32.totalorder %s17, 0
      %p70 = por %p68, %p69
      %s71 = ssub.s32 %s11, %s18
      %p72 = scmp.eq.s32.totalorder %s71, 0
      %s74 = sadd.s32 %s73, 1
      %s75 = scalar_select %p72, %s73, %s74
      %p78 = pneg %p72
      %p79 = scmp.eq.s32.totalorder %s11, 1
      %p80 = por %p78, %p79
      %p81 = scmp.ne.s32.totalorder %s73, %s76
      %p82 = scmp.eq.s32.totalorder %s11, 0
      %p83 = por %p81, %p82
      %p84 = scmp.ne.s32.totalorder %s73, %s76
      %p85 = scmp.eq.s32.totalorder %s16, 1
      %p86 = por %p84, %p85
      %p87 = scmp.ne.s32.totalorder %s76, %s77
      %p88 = scmp.eq.s32.totalorder %s16, 0
      %p89 = por %p87, %p88
      %p90 = scmp.ne.s32.totalorder %s76, %s77
      %p91 = scmp.eq.s32.totalorder %s17, 1
      %p92 = por %p90, %p91
      %p94 = scmp.ne.s32.totalorder %s77, %s93
      %p95 = scmp.eq.s32.totalorder %s17, 0
      %p96 = por %p94, %p95
      %p97 = scmp.le.s32.totalorder 1, %s11
      %p98 = scmp.lt.s32.totalorder %s11, 3
      %p99 = pnand %p97, %p98
      %p100 = pneg %p99
      // Predicated region
      $region9: #{spd_untangent_space.1} parent=5 // pred_check
        _
      $region10: #{spd_untangent_space.1} parent=5 // pred_check_branch
        %102 = sbr.rel (%p99) target = $region12
      $region11: #{spd_untangent_space.1} parent=5 // pred_region
        %s103 = ssub.s32 %s11, 1
      $region12: #{spd_untangent_space.1} parent=5 // pred_fallthru
        _
      %p104 = scmp.lt.s32.totalorder %s11, 2
      // Predicated region
      $region13: #{spd_untangent_space.1} parent=5 // pred_check
        %p105 = pneg %p104
      $region14: #{spd_untangent_space.1} parent=5 // pred_check_branch
        %107 = sbr.rel (%p105) target = $region16
      $region15: #{spd_untangent_space.1} parent=5 // pred_region
        // Predicated region
        $region17: #{spd_untangent_space.1} parent=15 // pred_check
          %p108 = pneg %p31
        $region18: #{spd_untangent_space.1} parent=15 // pred_check_branch
          %110 = sbr.rel (%p108) target = $region20
        $region19: #{spd_untangent_space.1} parent=15 // pred_region
          %s111 = sand.u32 %s21, 1
          %s112 = sand.u32 %s21, 1
          %s113 = smul.addr %s112, 64
          %s114 = scalar_lea.vmem [#allocation2], %s113
          %s115 = smul.addr %s11, 8
          %s116 = scalar_lea.vmem %s0, %s115
          // Predicated region
          $region21: #{spd_untangent_space.1} parent=19 // pred_check
            _
          $region22: #{spd_untangent_space.1} parent=19 // pred_check_branch
            %118 = sbr.rel (0) target = $region24
          $region23: #{spd_untangent_space.1} parent=19 // pred_region
            // Predicated region
            $region25: #{spd_untangent_space.1} parent=23 // pred_check
              _
            $region26: #{spd_untangent_space.1} parent=23 // pred_check_branch
              %120 = sbr.rel (0) target = $region28
            $region27: #{spd_untangent_space.1} parent=23 // pred_region
              // Predicated region
              $region40: #{spd_untangent_space.1} parent=27 // pred_check
                _
              $region41: #{spd_untangent_space.1} parent=27 // pred_check_branch
                %150 = sbr.rel (0) target = $region43
              $region42: #{spd_untangent_space.1} parent=27 // pred_region
                loop: start=0, step=1, limit=1
                $region44: #{spd_untangent_space.1} parent=42 // loop_pre_header
                  _
                $region45: #{spd_untangent_space.1} parent=42 // loop_header
                  %s152 = sphi 0, %s156
                  %p153 = scmp.ge.s32.totalorder %s152, 1
                  %s157 = sphi %s116, %s116
                  %s158 = sphi %s114, %s114
                $region46: #{spd_untangent_space.1} parent=42 // loop_header_branch
                  %155 = sbr.rel (%p153) target = $region50
                $region47: #{spd_untangent_space.1} parent=42 // loop_body
                  %v159 = vld [vmem:[%s157] sm:$0xff]
                  %160 = vst [vmem:[%s158] sm:$0xff] %v159
                  %v161 = vld [vmem:[%s157 + $0x10] sm:$0xff]
                  %162 = vst [vmem:[%s158 + $0x8] sm:$0xff] %v161
                  %v163 = vld [vmem:[%s157 + $0x20] sm:$0xff]
                  %164 = vst [vmem:[%s158 + $0x10] sm:$0xff] %v163
                  %v165 = vld [vmem:[%s157 + $0x30] sm:$0xff]
                  %166 = vst [vmem:[%s158 + $0x18] sm:$0xff] %v165
                  %v167 = vld [vmem:[%s157 + $0x40] sm:$0xff]
                  %168 = vst [vmem:[%s158 + $0x20] sm:$0xff] %v167
                  %v169 = vld [vmem:[%s157 + $0x50] sm:$0xff]
                  %170 = vst [vmem:[%s158 + $0x28] sm:$0xff] %v169
                  %v171 = vld [vmem:[%s157 + $0x60] sm:$0xff]
                  %172 = vst [vmem:[%s158 + $0x30] sm:$0xff] %v171
                  %v173 = vld [vmem:[%s157 + $0x70] sm:$0xff]
                  %174 = vst [vmem:[%s158 + $0x38] sm:$0xff] %v173
                $region48: #{spd_untangent_space.1} parent=42 // loop_footer
                  %s156 = sadd.s32 1, %s152
                $region49: #{spd_untangent_space.1} parent=42 // loop_footer_branch
                  %151 = sbr.rel target = $region45
                $region50: #{spd_untangent_space.1} parent=42 // loop_exit
                  _
              $region43: #{spd_untangent_space.1} parent=27 // pred_fallthru
                _
              // Predicated region
              $region51: #{spd_untangent_space.1} parent=27 // pred_check
                _
              $region52: #{spd_untangent_space.1} parent=27 // pred_check_branch
                %176 = sbr.rel target = $region54
              $region53: #{spd_untangent_space.1} parent=27 // pred_region
                _
              $region54: #{spd_untangent_space.1} parent=27 // pred_fallthru
                _
            $region28: #{spd_untangent_space.1} parent=23 // pred_fallthru
              _
            // Predicated region
            $region29: #{spd_untangent_space.1} parent=23 // pred_check
              _
            $region30: #{spd_untangent_space.1} parent=23 // pred_check_branch
              %122 = sbr.rel target = $region32
            $region31: #{spd_untangent_space.1} parent=23 // pred_region
              %s124 = ssub.s32 256, 1
              loop: start=0, step=1, limit=1
              $region33: #{spd_untangent_space.1} parent=31 // loop_pre_header
                _
              $region34: #{spd_untangent_space.1} parent=31 // loop_header
                %s126 = sphi 0, %s130
                %p127 = scmp.ge.s32.totalorder %s126, 1
                %s131 = sphi %s116, %s116
                %s132 = sphi %s114, %s114
              $region35: #{spd_untangent_space.1} parent=31 // loop_header_branch
                %129 = sbr.rel (%p127) target = $region39
              $region36: #{spd_untangent_space.1} parent=31 // loop_body
                %v133 = vld [vmem:[%s131] sm:%s124]
                %134 = vst [vmem:[%s132] sm:%s124] %v133
                %v135 = vld [vmem:[%s131 + $0x10] sm:%s124]
                %136 = vst [vmem:[%s132 + $0x8] sm:%s124] %v135
                %v137 = vld [vmem:[%s131 + $0x20] sm:%s124]
                %138 = vst [vmem:[%s132 + $0x10] sm:%s124] %v137
                %v139 = vld [vmem:[%s131 + $0x30] sm:%s124]
                %140 = vst [vmem:[%s132 + $0x18] sm:%s124] %v139
                %v141 = vld [vmem:[%s131 + $0x40] sm:%s124]
                %142 = vst [vmem:[%s132 + $0x20] sm:%s124] %v141
                %v143 = vld [vmem:[%s131 + $0x50] sm:%s124]
                %144 = vst [vmem:[%s132 + $0x28] sm:%s124] %v143
                %v145 = vld [vmem:[%s131 + $0x60] sm:%s124]
                %146 = vst [vmem:[%s132 + $0x30] sm:%s124] %v145
                %v147 = vld [vmem:[%s131 + $0x70] sm:%s124]
                %148 = vst [vmem:[%s132 + $0x38] sm:%s124] %v147
              $region37: #{spd_untangent_space.1} parent=31 // loop_footer
                %s130 = sadd.s32 1, %s126
              $region38: #{spd_untangent_space.1} parent=31 // loop_footer_branch
                %125 = sbr.rel target = $region34
              $region39: #{spd_untangent_space.1} parent=31 // loop_exit
                _
            $region32: #{spd_untangent_space.1} parent=23 // pred_fallthru
              _
          $region24: #{spd_untangent_space.1} parent=19 // pred_fallthru
            _
          %177 = vnop
        $region20: #{spd_untangent_space.1} parent=15 // pred_fallthru
          _
        // Predicated region
        $region55: #{spd_untangent_space.1} parent=15 // pred_check
          %p178 = pneg %p57
        $region56: #{spd_untangent_space.1} parent=15 // pred_check_branch
          %180 = sbr.rel (%p178) target = $region58
        $region57: #{spd_untangent_space.1} parent=15 // pred_region
          %p181 = scmp.lt.s32.totalorder %s11, 1
          %s182 = scalar_select %p181, %s11, 1
          %s183 = smul.addr %s182, 8
          %s184 = scalar_lea.vmem %s1, %s183
        $region58: #{spd_untangent_space.1} parent=15 // pred_fallthru
          _
      $region16: #{spd_untangent_space.1} parent=5 // pred_fallthru
        _
      %p185 = scmp.le.s32.totalorder 1, %s11
      %p186 = scmp.lt.s32.totalorder %s11, 3
      %p187 = pnand %p185, %p186
      %p188 = pneg %p187
      // Predicated region
      $region59: #{spd_untangent_space.1} parent=5 // pred_check
        _
      $region60: #{spd_untangent_space.1} parent=5 // pred_check_branch
        %190 = sbr.rel (%p187) target = $region62
      $region61: #{spd_untangent_space.1} parent=5 // pred_region
        %s191 = ssub.s32 %s11, 1
        %s192 = sand.u32 %s24, 1
        %s193 = sand.u32 %s24, 1
        %s194 = smul.addr %s193, 64
        %s195 = scalar_lea.vmem [#allocation2], %s194
        // Predicated region
        $region63: #{spd_untangent_space.1} parent=61 // pred_check
          %p196 = pneg %p37
        $region64: #{spd_untangent_space.1} parent=61 // pred_check_branch
          %198 = sbr.rel (%p196) target = $region66
        $region65: #{spd_untangent_space.1} parent=61 // pred_region
          _
        $region66: #{spd_untangent_space.1} parent=61 // pred_fallthru
          _
        %s199 = sand.u32 %s24, 1
        %s200 = sand.u32 %s24, 1
        %s201 = smul.addr %s200, 64
        %s202 = scalar_lea.vmem [#allocation2], %s201
        %p203 = pneg %p37
        %p204 = pneg %p34
        %p205 = scmp.lt.s32.totalorder %s16, 1
        %s206 = scalar_select %p205, %s16, 1
        %s207 = smul.addr %s206, 8
        %s208 = scalar_lea.vmem %s1, %s207
        %p209 = pneg %p63
        %p210 = pneg %p60
        %p211 = pneg %p89
        %p212 = pneg %p86
        %s213 = sand.u32 %s76, 1
        %s214 = scalar_lea.sflag [#allocation4], %s213
        %s215 = sand.u32 %s76, 1
        %s216 = smul.addr %s215, 64
        %s217 = scalar_lea.vmem [#allocation3], %s216
        %p218 = scmp.lt.s32.totalorder %s16, 1
        %s219 = scalar_select %p218, %s16, 1
        %s220 = smul.addr %s219, 8
        %s221 = scalar_lea.vmem %s1, %s220
        %v222 = vld [vmem:[%s221] sm:$0xff]
        %v223 = vand.u32 2147483647, %v222
        %v224 = vmul.f32 %v223, 1.442695
        %v225 = vpow.pop %v224
        %v226 = vld [vmem:[%s195] sm:$0x1]
        %v227 = vld [vmem:[%s195 + $0x8] sm:$0x1]
        %v228 = vld [vmem:[%s195 + $0x10] sm:$0x1]
        %v229 = vld [vmem:[%s195 + $0x18] sm:$0x1]
        %v230 = vld [vmem:[%s195 + $0x20] sm:$0x1]
        %v231 = vld [vmem:[%s195 + $0x28] sm:$0x1]
        %v232 = vld [vmem:[%s195 + $0x30] sm:$0x1]
        %v233 = vld [vmem:[%s195 + $0x38] sm:$0x1]
        %v234 = vperm.slane %v225, 0
        %v235 = vmul.f32 %v226, %v234
        %v236 = vmul.f32 %v227, %v234
        %v237 = vmul.f32 %v228, %v234
        %v238 = vmul.f32 %v229, %v234
        %v239 = vmul.f32 %v230, %v234
        %v240 = vmul.f32 %v231, %v234
        %v241 = vmul.f32 %v232, %v234
        %v242 = vmul.f32 %v233, %v234
        %v243 = vperm.slane %v235, 0
        %v244 = vperm.slane %v236, 0
        %v245 = vperm.slane %v237, 0
        %v246 = vperm.slane %v238, 0
        %v247 = vperm.slane %v239, 0
        %v248 = vperm.slane %v240, 0
        %v249 = vperm.slane %v241, 0
        %v250 = vperm.slane %v242, 0
        %v259 = vrot.slane %v227, 7
        %vm260 = vcmask 1041409
        %v261 = vsel %vm260, %v259, %v226
        %v262 = vrot.slane %v228, 6
        %vm263 = vcmask 1042434
        %v264 = vsel %vm263, %v262, %v261
        %v265 = vrot.slane %v229, 5
        %vm266 = vcmask 1043459
        %v267 = vsel %vm266, %v265, %v264
        %v268 = vrot.slane %v230, 4
        %vm269 = vcmask 1044484
        %v270 = vsel %vm269, %v268, %v267
        %v271 = vrot.slane %v231, 3
        %vm272 = vcmask 1045509
        %v273 = vsel %vm272, %v271, %v270
        %v274 = vrot.slane %v232, 2
        %vm275 = vcmask 1046534
        %v276 = vsel %vm275, %v274, %v273
        %v277 = vrot.slane %v233, 1
        %vm278 = vcmask 1047559
        %v279 = vsel %vm278, %v277, %v276
        %v281 = vmul.f32 %v243, %v279
        %v282 = vmul.f32 %v244, %v279
        %v283 = vmul.f32 %v245, %v279
        %v284 = vmul.f32 %v246, %v279
        %v285 = vmul.f32 %v247, %v279
        %v286 = vmul.f32 %v248, %v279
        %v287 = vmul.f32 %v249, %v279
        %v288 = vmul.f32 %v250, %v279
        %v289 = vld [vmem:[%s195 + $0x1] sm:$0x1]
        %v290 = vld [vmem:[%s195 + $0x9] sm:$0x1]
        %v291 = vld [vmem:[%s195 + $0x11] sm:$0x1]
        %v292 = vld [vmem:[%s195 + $0x19] sm:$0x1]
        %v293 = vld [vmem:[%s195 + $0x21] sm:$0x1]
        %v294 = vld [vmem:[%s195 + $0x29] sm:$0x1]
        %v295 = vld [vmem:[%s195 + $0x31] sm:$0x1]
        %v296 = vld [vmem:[%s195 + $0x39] sm:$0x1]
        %v297 = vperm.slane %v225, 1
        %v298 = vmul.f32 %v289, %v297
        %v299 = vmul.f32 %v290, %v297
        %v300 = vmul.f32 %v291, %v297
        %v301 = vmul.f32 %v292, %v297
        %v302 = vmul.f32 %v293, %v297
        %v303 = vmul.f32 %v294, %v297
        %v304 = vmul.f32 %v295, %v297
        %v305 = vmul.f32 %v296, %v297
        %v306 = vperm.slane %v298, 0
        %v307 = vperm.slane %v299, 0
        %v308 = vperm.slane %v300, 0
        %v309 = vperm.slane %v301, 0
        %v310 = vperm.slane %v302, 0
        %v311 = vperm.slane %v303, 0
        %v312 = vperm.slane %v304, 0
        %v313 = vperm.slane %v305, 0
        %v322 = vrot.slane %v290, 7
        %v323 = vsel %vm260, %v322, %v289
        %v324 = vrot.slane %v291, 6
        %v325 = vsel %vm263, %v324, %v323
        %v326 = vrot.slane %v292, 5
        %v327 = vsel %vm266, %v326, %v325
        %v328 = vrot.slane %v293, 4
        %v329 = vsel %vm269, %v328, %v327
        %v330 = vrot.slane %v294, 3
        %v331 = vsel %vm272, %v330, %v329
        %v332 = vrot.slane %v295, 2
        %v333 = vsel %vm275, %v332, %v331
        %v334 = vrot.slane %v296, 1
        %v335 = vsel %vm278, %v334, %v333
        %v337 = vmul.f32 %v306, %v335
        %v338 = vmul.f32 %v307, %v335
        %v339 = vmul.f32 %v308, %v335
        %v340 = vmul.f32 %v309, %v335
        %v341 = vmul.f32 %v310, %v335
        %v342 = vmul.f32 %v311, %v335
        %v343 = vmul.f32 %v312, %v335
        %v344 = vmul.f32 %v313, %v335
        %v345 = vadd.f32 %v281, %v337
        %v346 = vadd.f32 %v282, %v338
        %v347 = vadd.f32 %v283, %v339
        %v348 = vadd.f32 %v284, %v340
        %v349 = vadd.f32 %v285, %v341
        %v350 = vadd.f32 %v286, %v342
        %v351 = vadd.f32 %v287, %v343
        %v352 = vadd.f32 %v288, %v344
        %v353 = vld [vmem:[%s195 + $0x2] sm:$0x1]
        %v354 = vld [vmem:[%s195 + $0xa] sm:$0x1]
        %v355 = vld [vmem:[%s195 + $0x12] sm:$0x1]
        %v356 = vld [vmem:[%s195 + $0x1a] sm:$0x1]
        %v357 = vld [vmem:[%s195 + $0x22] sm:$0x1]
        %v358 = vld [vmem:[%s195 + $0x2a] sm:$0x1]
        %v359 = vld [vmem:[%s195 + $0x32] sm:$0x1]
        %v360 = vld [vmem:[%s195 + $0x3a] sm:$0x1]
        %v361 = vperm.slane %v225, 2
        %v362 = vmul.f32 %v353, %v361
        %v363 = vmul.f32 %v354, %v361
        %v364 = vmul.f32 %v355, %v361
        %v365 = vmul.f32 %v356, %v361
        %v366 = vmul.f32 %v357, %v361
        %v367 = vmul.f32 %v358, %v361
        %v368 = vmul.f32 %v359, %v361
        %v369 = vmul.f32 %v360, %v361
        %v370 = vperm.slane %v362, 0
        %v371 = vperm.slane %v363, 0
        %v372 = vperm.slane %v364, 0
        %v373 = vperm.slane %v365, 0
        %v374 = vperm.slane %v366, 0
        %v375 = vperm.slane %v367, 0
        %v376 = vperm.slane %v368, 0
        %v377 = vperm.slane %v369, 0
        %v386 = vrot.slane %v354, 7
        %v387 = vsel %vm260, %v386, %v353
        %v388 = vrot.slane %v355, 6
        %v389 = vsel %vm263, %v388, %v387
        %v390 = vrot.slane %v356, 5
        %v391 = vsel %vm266, %v390, %v389
        %v392 = vrot.slane %v357, 4
        %v393 = vsel %vm269, %v392, %v391
        %v394 = vrot.slane %v358, 3
        %v395 = vsel %vm272, %v394, %v393
        %v396 = vrot.slane %v359, 2
        %v397 = vsel %vm275, %v396, %v395
        %v398 = vrot.slane %v360, 1
        %v399 = vsel %vm278, %v398, %v397
        %v401 = vmul.f32 %v370, %v399
        %v402 = vmul.f32 %v371, %v399
        %v403 = vmul.f32 %v372, %v399
        %v404 = vmul.f32 %v373, %v399
        %v405 = vmul.f32 %v374, %v399
        %v406 = vmul.f32 %v375, %v399
        %v407 = vmul.f32 %v376, %v399
        %v408 = vmul.f32 %v377, %v399
        %v409 = vadd.f32 %v345, %v401
        %v410 = vadd.f32 %v346, %v402
        %v411 = vadd.f32 %v347, %v403
        %v412 = vadd.f32 %v348, %v404
        %v413 = vadd.f32 %v349, %v405
        %v414 = vadd.f32 %v350, %v406
        %v415 = vadd.f32 %v351, %v407
        %v416 = vadd.f32 %v352, %v408
        %v417 = vld [vmem:[%s195 + $0x3] sm:$0x1]
        %v418 = vld [vmem:[%s195 + $0xb] sm:$0x1]
        %v419 = vld [vmem:[%s195 + $0x13] sm:$0x1]
        %v420 = vld [vmem:[%s195 + $0x1b] sm:$0x1]
        %v421 = vld [vmem:[%s195 + $0x23] sm:$0x1]
        %v422 = vld [vmem:[%s195 + $0x2b] sm:$0x1]
        %v423 = vld [vmem:[%s195 + $0x33] sm:$0x1]
        %v424 = vld [vmem:[%s195 + $0x3b] sm:$0x1]
        %v425 = vperm.slane %v225, 3
        %v426 = vmul.f32 %v417, %v425
        %v427 = vmul.f32 %v418, %v425
        %v428 = vmul.f32 %v419, %v425
        %v429 = vmul.f32 %v420, %v425
        %v430 = vmul.f32 %v421, %v425
        %v431 = vmul.f32 %v422, %v425
        %v432 = vmul.f32 %v423, %v425
        %v433 = vmul.f32 %v424, %v425
        %v434 = vperm.slane %v426, 0
        %v435 = vperm.slane %v427, 0
        %v436 = vperm.slane %v428, 0
        %v437 = vperm.slane %v429, 0
        %v438 = vperm.slane %v430, 0
        %v439 = vperm.slane %v431, 0
        %v440 = vperm.slane %v432, 0
        %v441 = vperm.slane %v433, 0
        %v450 = vrot.slane %v418, 7
        %v451 = vsel %vm260, %v450, %v417
        %v452 = vrot.slane %v419, 6
        %v453 = vsel %vm263, %v452, %v451
        %v454 = vrot.slane %v420, 5
        %v455 = vsel %vm266, %v454, %v453
        %v456 = vrot.slane %v421, 4
        %v457 = vsel %vm269, %v456, %v455
        %v458 = vrot.slane %v422, 3
        %v459 = vsel %vm272, %v458, %v457
        %v460 = vrot.slane %v423, 2
        %v461 = vsel %vm275, %v460, %v459
        %v462 = vrot.slane %v424, 1
        %v463 = vsel %vm278, %v462, %v461
        %v465 = vmul.f32 %v434, %v463
        %v466 = vmul.f32 %v435, %v463
        %v467 = vmul.f32 %v436, %v463
        %v468 = vmul.f32 %v437, %v463
        %v469 = vmul.f32 %v438, %v463
        %v470 = vmul.f32 %v439, %v463
        %v471 = vmul.f32 %v440, %v463
        %v472 = vmul.f32 %v441, %v463
        %v473 = vadd.f32 %v409, %v465
        %v474 = vadd.f32 %v410, %v466
        %v475 = vadd.f32 %v411, %v467
        %v476 = vadd.f32 %v412, %v468
        %v477 = vadd.f32 %v413, %v469
        %v478 = vadd.f32 %v414, %v470
        %v479 = vadd.f32 %v415, %v471
        %v480 = vadd.f32 %v416, %v472
        %v481 = vld [vmem:[%s195 + $0x4] sm:$0x1]
        %v482 = vld [vmem:[%s195 + $0xc] sm:$0x1]
        %v483 = vld [vmem:[%s195 + $0x14] sm:$0x1]
        %v484 = vld [vmem:[%s195 + $0x1c] sm:$0x1]
        %v485 = vld [vmem:[%s195 + $0x24] sm:$0x1]
        %v486 = vld [vmem:[%s195 + $0x2c] sm:$0x1]
        %v487 = vld [vmem:[%s195 + $0x34] sm:$0x1]
        %v488 = vld [vmem:[%s195 + $0x3c] sm:$0x1]
        %v489 = vperm.slane %v225, 4
        %v490 = vmul.f32 %v481, %v489
        %v491 = vmul.f32 %v482, %v489
        %v492 = vmul.f32 %v483, %v489
        %v493 = vmul.f32 %v484, %v489
        %v494 = vmul.f32 %v485, %v489
        %v495 = vmul.f32 %v486, %v489
        %v496 = vmul.f32 %v487, %v489
        %v497 = vmul.f32 %v488, %v489
        %v498 = vperm.slane %v490, 0
        %v499 = vperm.slane %v491, 0
        %v500 = vperm.slane %v492, 0
        %v501 = vperm.slane %v493, 0
        %v502 = vperm.slane %v494, 0
        %v503 = vperm.slane %v495, 0
        %v504 = vperm.slane %v496, 0
        %v505 = vperm.slane %v497, 0
        %v514 = vrot.slane %v482, 7
        %v515 = vsel %vm260, %v514, %v481
        %v516 = vrot.slane %v483, 6
        %v517 = vsel %vm263, %v516, %v515
        %v518 = vrot.slane %v484, 5
        %v519 = vsel %vm266, %v518, %v517
        %v520 = vrot.slane %v485, 4
        %v521 = vsel %vm269, %v520, %v519
        %v522 = vrot.slane %v486, 3
        %v523 = vsel %vm272, %v522, %v521
        %v524 = vrot.slane %v487, 2
        %v525 = vsel %vm275, %v524, %v523
        %v526 = vrot.slane %v488, 1
        %v527 = vsel %vm278, %v526, %v525
        %v529 = vmul.f32 %v498, %v527
        %v530 = vmul.f32 %v499, %v527
        %v531 = vmul.f32 %v500, %v527
        %v532 = vmul.f32 %v501, %v527
        %v533 = vmul.f32 %v502, %v527
        %v534 = vmul.f32 %v503, %v527
        %v535 = vmul.f32 %v504, %v527
        %v536 = vmul.f32 %v505, %v527
        %v537 = vadd.f32 %v473, %v529
        %v538 = vadd.f32 %v474, %v530
        %v539 = vadd.f32 %v475, %v531
        %v540 = vadd.f32 %v476, %v532
        %v541 = vadd.f32 %v477, %v533
        %v542 = vadd.f32 %v478, %v534
        %v543 = vadd.f32 %v479, %v535
        %v544 = vadd.f32 %v480, %v536
        %v545 = vld [vmem:[%s195 + $0x5] sm:$0x1]
        %v546 = vld [vmem:[%s195 + $0xd] sm:$0x1]
        %v547 = vld [vmem:[%s195 + $0x15] sm:$0x1]
        %v548 = vld [vmem:[%s195 + $0x1d] sm:$0x1]
        %v549 = vld [vmem:[%s195 + $0x25] sm:$0x1]
        %v550 = vld [vmem:[%s195 + $0x2d] sm:$0x1]
        %v551 = vld [vmem:[%s195 + $0x35] sm:$0x1]
        %v552 = vld [vmem:[%s195 + $0x3d] sm:$0x1]
        %v553 = vperm.slane %v225, 5
        %v554 = vmul.f32 %v545, %v553
        %v555 = vmul.f32 %v546, %v553
        %v556 = vmul.f32 %v547, %v553
        %v557 = vmul.f32 %v548, %v553
        %v558 = vmul.f32 %v549, %v553
        %v559 = vmul.f32 %v550, %v553
        %v560 = vmul.f32 %v551, %v553
        %v561 = vmul.f32 %v552, %v553
        %v562 = vperm.slane %v554, 0
        %v563 = vperm.slane %v555, 0
        %v564 = vperm.slane %v556, 0
        %v565 = vperm.slane %v557, 0
        %v566 = vperm.slane %v558, 0
        %v567 = vperm.slane %v559, 0
        %v568 = vperm.slane %v560, 0
        %v569 = vperm.slane %v561, 0
        %v578 = vrot.slane %v546, 7
        %v579 = vsel %vm260, %v578, %v545
        %v580 = vrot.slane %v547, 6
        %v581 = vsel %vm263, %v580, %v579
        %v582 = vrot.slane %v548, 5
        %v583 = vsel %vm266, %v582, %v581
        %v584 = vrot.slane %v549, 4
        %v585 = vsel %vm269, %v584, %v583
        %v586 = vrot.slane %v550, 3
        %v587 = vsel %vm272, %v586, %v585
        %v588 = vrot.slane %v551, 2
        %v589 = vsel %vm275, %v588, %v587
        %v590 = vrot.slane %v552, 1
        %v591 = vsel %vm278, %v590, %v589
        %v593 = vmul.f32 %v562, %v591
        %v594 = vmul.f32 %v563, %v591
        %v595 = vmul.f32 %v564, %v591
        %v596 = vmul.f32 %v565, %v591
        %v597 = vmul.f32 %v566, %v591
        %v598 = vmul.f32 %v567, %v591
        %v599 = vmul.f32 %v568, %v591
        %v600 = vmul.f32 %v569, %v591
        %v601 = vadd.f32 %v537, %v593
        %v602 = vadd.f32 %v538, %v594
        %v603 = vadd.f32 %v539, %v595
        %v604 = vadd.f32 %v540, %v596
        %v605 = vadd.f32 %v541, %v597
        %v606 = vadd.f32 %v542, %v598
        %v607 = vadd.f32 %v543, %v599
        %v608 = vadd.f32 %v544, %v600
        %v609 = vld [vmem:[%s195 + $0x6] sm:$0x1]
        %v610 = vld [vmem:[%s195 + $0xe] sm:$0x1]
        %v611 = vld [vmem:[%s195 + $0x16] sm:$0x1]
        %v612 = vld [vmem:[%s195 + $0x1e] sm:$0x1]
        %v613 = vld [vmem:[%s195 + $0x26] sm:$0x1]
        %v614 = vld [vmem:[%s195 + $0x2e] sm:$0x1]
        %v615 = vld [vmem:[%s195 + $0x36] sm:$0x1]
        %v616 = vld [vmem:[%s195 + $0x3e] sm:$0x1]
        %v617 = vperm.slane %v225, 6
        %v618 = vmul.f32 %v609, %v617
        %v619 = vmul.f32 %v610, %v617
        %v620 = vmul.f32 %v611, %v617
        %v621 = vmul.f32 %v612, %v617
        %v622 = vmul.f32 %v613, %v617
        %v623 = vmul.f32 %v614, %v617
        %v624 = vmul.f32 %v615, %v617
        %v625 = vmul.f32 %v616, %v617
        %v626 = vperm.slane %v618, 0
        %v627 = vperm.slane %v619, 0
        %v628 = vperm.slane %v620, 0
        %v629 = vperm.slane %v621, 0
        %v630 = vperm.slane %v622, 0
        %v631 = vperm.slane %v623, 0
        %v632 = vperm.slane %v624, 0
        %v633 = vperm.slane %v625, 0
        %v642 = vrot.slane %v610, 7
        %v643 = vsel %vm260, %v642, %v609
        %v644 = vrot.slane %v611, 6
        %v645 = vsel %vm263, %v644, %v643
        %v646 = vrot.slane %v612, 5
        %v647 = vsel %vm266, %v646, %v645
        %v648 = vrot.slane %v613, 4
        %v649 = vsel %vm269, %v648, %v647
        %v650 = vrot.slane %v614, 3
        %v651 = vsel %vm272, %v650, %v649
        %v652 = vrot.slane %v615, 2
        %v653 = vsel %vm275, %v652, %v651
        %v654 = vrot.slane %v616, 1
        %v655 = vsel %vm278, %v654, %v653
        %v657 = vmul.f32 %v626, %v655
        %v658 = vmul.f32 %v627, %v655
        %v659 = vmul.f32 %v628, %v655
        %v660 = vmul.f32 %v629, %v655
        %v661 = vmul.f32 %v630, %v655
        %v662 = vmul.f32 %v631, %v655
        %v663 = vmul.f32 %v632, %v655
        %v664 = vmul.f32 %v633, %v655
        %v665 = vadd.f32 %v601, %v657
        %v666 = vadd.f32 %v602, %v658
        %v667 = vadd.f32 %v603, %v659
        %v668 = vadd.f32 %v604, %v660
        %v669 = vadd.f32 %v605, %v661
        %v670 = vadd.f32 %v606, %v662
        %v671 = vadd.f32 %v607, %v663
        %v672 = vadd.f32 %v608, %v664
        %v673 = vld [vmem:[%s195 + $0x7] sm:$0x1]
        %v674 = vld [vmem:[%s195 + $0xf] sm:$0x1]
        %v675 = vld [vmem:[%s195 + $0x17] sm:$0x1]
        %v676 = vld [vmem:[%s195 + $0x1f] sm:$0x1]
        %v677 = vld [vmem:[%s195 + $0x27] sm:$0x1]
        %v678 = vld [vmem:[%s195 + $0x2f] sm:$0x1]
        %v679 = vld [vmem:[%s195 + $0x37] sm:$0x1]
        %v680 = vld [vmem:[%s195 + $0x3f] sm:$0x1]
        %v681 = vperm.slane %v225, 7
        %v682 = vmul.f32 %v673, %v681
        %v683 = vmul.f32 %v674, %v681
        %v684 = vmul.f32 %v675, %v681
        %v685 = vmul.f32 %v676, %v681
        %v686 = vmul.f32 %v677, %v681
        %v687 = vmul.f32 %v678, %v681
        %v688 = vmul.f32 %v679, %v681
        %v689 = vmul.f32 %v680, %v681
        %v690 = vperm.slane %v682, 0
        %v691 = vperm.slane %v683, 0
        %v692 = vperm.slane %v684, 0
        %v693 = vperm.slane %v685, 0
        %v694 = vperm.slane %v686, 0
        %v695 = vperm.slane %v687, 0
        %v696 = vperm.slane %v688, 0
        %v697 = vperm.slane %v689, 0
        %v706 = vrot.slane %v674, 7
        %v707 = vsel %vm260, %v706, %v673
        %v708 = vrot.slane %v675, 6
        %v709 = vsel %vm263, %v708, %v707
        %v710 = vrot.slane %v676, 5
        %v711 = vsel %vm266, %v710, %v709
        %v712 = vrot.slane %v677, 4
        %v713 = vsel %vm269, %v712, %v711
        %v714 = vrot.slane %v678, 3
        %v715 = vsel %vm272, %v714, %v713
        %v716 = vrot.slane %v679, 2
        %v717 = vsel %vm275, %v716, %v715
        %v718 = vrot.slane %v680, 1
        %v719 = vsel %vm278, %v718, %v717
        %v721 = vmul.f32 %v690, %v719
        %v722 = vmul.f32 %v691, %v719
        %v723 = vmul.f32 %v692, %v719
        %v724 = vmul.f32 %v693, %v719
        %v725 = vmul.f32 %v694, %v719
        %v726 = vmul.f32 %v695, %v719
        %v727 = vmul.f32 %v696, %v719
        %v728 = vmul.f32 %v697, %v719
        %v729 = vadd.f32 %v665, %v721
        %v730 = vadd.f32 %v666, %v722
        %v731 = vadd.f32 %v667, %v723
        %v732 = vadd.f32 %v668, %v724
        %v733 = vadd.f32 %v669, %v725
        %v734 = vadd.f32 %v670, %v726
        %v735 = vadd.f32 %v671, %v727
        %v736 = vadd.f32 %v672, %v728
        %737 = vst [vmem:[%s217] sm:$0xff] %v729
        %738 = vst [vmem:[%s217 + $0x8] sm:$0xff] %v730
        %739 = vst [vmem:[%s217 + $0x10] sm:$0xff] %v731
        %740 = vst [vmem:[%s217 + $0x18] sm:$0xff] %v732
        %741 = vst [vmem:[%s217 + $0x20] sm:$0xff] %v733
        %742 = vst [vmem:[%s217 + $0x28] sm:$0xff] %v734
        %743 = vst [vmem:[%s217 + $0x30] sm:$0xff] %v735
        %744 = vst [vmem:[%s217 + $0x38] sm:$0xff] %v736
        %s745 = sand.u32 %s76, 1
        %s746 = scalar_lea.sflag [#allocation4], %s745
        %s747 = sand.u32 %s76, 1
        %s748 = smul.addr %s747, 64
        %s749 = scalar_lea.vmem [#allocation3], %s748
        // Predicated region
        $region67: #{spd_untangent_space.1} parent=61 // pred_check
          %p750 = pneg %p86
        $region68: #{spd_untangent_space.1} parent=61 // pred_check_branch
          %752 = sbr.rel (%p750) target = $region70
        $region69: #{spd_untangent_space.1} parent=61 // pred_region
          %754 = vsyncadd %s746, 0
          %s755 = smul.addr %s16, 8
          %s756 = scalar_lea.hbm %s2, %s755
          %s757 = sshll.u32 %s749, 4
          %s758 = int_to_ptr.vmem [resolvable:$true] %s757
          %s759 = sshll.u32 %s756, 4
          %s760 = int_to_ptr.hbm [resolvable:$true] %s759
          %765 = dma.vmem_to_hbm [thread:$0]  %s758, 1024, %s760, %s746, 128, 256, 8
        $region70: #{spd_untangent_space.1} parent=61 // pred_fallthru
          _
      $region62: #{spd_untangent_space.1} parent=5 // pred_fallthru
        _
      %p766 = scmp.le.s32.totalorder 2, %s11
      // Predicated region
      $region71: #{spd_untangent_space.1} parent=5 // pred_check
        %p767 = pneg %p766
      $region72: #{spd_untangent_space.1} parent=5 // pred_check_branch
        %769 = sbr.rel (%p767) target = $region74
      $region73: #{spd_untangent_space.1} parent=5 // pred_region
        %s770 = ssub.s32 %s11, 2
        // Predicated region
        $region75: #{spd_untangent_space.1} parent=73 // pred_check
          %p771 = pneg %p92
        $region76: #{spd_untangent_space.1} parent=73 // pred_check_branch
          %773 = sbr.rel (%p771) target = $region78
        $region77: #{spd_untangent_space.1} parent=73 // pred_region
          %s774 = sand.u32 %s77, 1
          %s775 = scalar_lea.sflag [#allocation4], %s774
          %s776 = sand.u32 %s77, 1
          %s777 = smul.addr %s776, 64
          %s778 = scalar_lea.vmem [#allocation3], %s777
          %780 = dma.done %s775, 1024
        $region78: #{spd_untangent_space.1} parent=73 // pred_fallthru
          _
      $region74: #{spd_untangent_space.1} parent=5 // pred_fallthru
        _
    $region6: #{spd_untangent_space.1} parent=1 // loop_footer
      %s15 = sadd.s32 1, %s11
    $region7: #{spd_untangent_space.1} parent=1 // loop_footer_branch
      %10 = sbr.rel target = $region3
    $region8: #{spd_untangent_space.1} parent=1 // loop_exit
      _
    %781 = vsyncpa [#allocation4], 1
    %s782 = scalar_lea.sflag [#allocation4], 1
    %783 = vsyncpa %s782, 1

</llo_original>
